<compile_context>
chip_gen: v5e
topology: v5e:2x2
jax: 0.10.0
libtpu: 0.0.40
codegen_flags: <defaults>
</compile_context>

<pallas_src>
import functools

import jax
import jax.numpy as jnp
from jax.experimental import pallas as pl
from jax.experimental.pallas import tpu as pltpu

CIN = 3
COUT = 3
KH = 3
KW = 3


def conv3x3_kernel(x_ref, w_ref, b_ref, o_ref, *, n_batch, height, width):
    # x_ref : (N*CIN, H*W)   activations, VMEM (lane-dense)
    # w_ref : (COUT*CIN*KH*KW,) = (81,)  weight scalars, SMEM
    # b_ref : (COUT,)        bias scalars, SMEM
    # o_ref : (N*COUT, H*W)  output, VMEM (lane-dense)
    H, W = height, width
    HW = H * W
    NC = n_batch * CIN

    x = x_ref[...].astype(jnp.float32)                        # (NC, HW)

    # Flattened pixel index p = h*W + w along the lane axis, and its column w.
    lane = jax.lax.broadcasted_iota(jnp.int32, (NC, HW), 1)
    col = lane % W

    # Precompute the 9 shifted input planes (one per conv tap). For tap
    # (kh, kw) with (dh, dw) = (kh-1, kw-1) we need shifted[p] = x[p + s],
    # s = dh*W + dw, zeroed where the source pixel is out of bounds (this
    # implements padding=1). pltpu.roll follows jnp.roll semantics (element i
    # moves to i+shift), so shifted = roll(x, -s). Rolls wrap only within one
    # (batch, channel) row, and every wrapped element is exactly an
    # out-of-bounds source pixel, which the mask zeroes.
    planes = []
    for kh in range(KH):
        for kw in range(KW):
            dh, dw = kh - 1, kw - 1
            s = dh * W + dw
            xs = x if s == 0 else pltpu.roll(x, (-s) % HW, axis=1)
            mask = None
            if dh == -1:                      # source row h-1 -> need h >= 1
                mask = lane >= W
            elif dh == 1:                     # source row h+1 -> need h <= H-2
                mask = lane < (H - 1) * W
            if dw == -1:                      # source col w-1 -> need w >= 1
                c = col >= 1
                mask = c if mask is None else (mask & c)
            elif dw == 1:                     # source col w+1 -> need w <= W-2
                c = col < (W - 1)
                mask = c if mask is None else (mask & c)
            if mask is not None:
                xs = jnp.where(mask, xs, 0.0)
            planes.append(xs)

    # Scalars from SMEM: read once, reused for every batch element.
    wvals = [w_ref[i] for i in range(COUT * CIN * KH * KW)]
    bvals = [b_ref[c] for c in range(COUT)]

    # VPU FMAs: out[n*COUT+co] = b[co] + sum_{ci,kh,kw} w[co,ci,kh,kw] *
    #                                     plane[kh,kw][n*CIN+ci]
    for n in range(n_batch):
        accs = [jnp.full((1, HW), bvals[co], dtype=jnp.float32)
                for co in range(COUT)]
        for ci in range(CIN):
            r = n * CIN + ci
            taps_r = [planes[t][r:r + 1, :] for t in range(KH * KW)]
            for co in range(COUT):
                acc = accs[co]
                for t in range(KH * KW):
                    kh, kw = divmod(t, KW)
                    widx = ((co * CIN + ci) * KH + kh) * KW + kw
                    acc = acc + wvals[widx] * taps_r[t]
                accs[co] = acc
        for co in range(COUT):
            row = n * COUT + co
            o_ref[row:row + 1, :] = accs[co].astype(o_ref.dtype)


@jax.jit
def conv3x3_pallas(x_nchw, weight, bias):
    """x_nchw: (N, 3, H, W); weight: (3, 3, 3, 3) OIHW; bias: (3,). Returns NCHW."""
    N, C, H, W = x_nchw.shape
    assert C == CIN
    HW = H * W

    # Free reshapes on contiguous NCHW data (no transpose, no pad).
    x2d = x_nchw.reshape(N * CIN, HW)
    w_flat = weight.astype(jnp.float32).reshape(COUT * CIN * KH * KW)
    b_flat = bias.astype(jnp.float32).reshape(COUT)

    kernel = functools.partial(conv3x3_kernel, n_batch=N, height=H, width=W)

    out2d = pl.pallas_call(
        kernel,
        out_shape=jax.ShapeDtypeStruct((N * COUT, HW), x_nchw.dtype),
        in_specs=[
            pl.BlockSpec(memory_space=pltpu.MemorySpace.VMEM),   # activations
            pl.BlockSpec(memory_space=pltpu.MemorySpace.SMEM),   # 81 weights
            pl.BlockSpec(memory_space=pltpu.MemorySpace.SMEM),   # 3 biases
        ],
        out_specs=pl.BlockSpec(memory_space=pltpu.MemorySpace.VMEM),
        cost_estimate=pl.CostEstimate(
            flops=2 * N * H * W * KH * KW * CIN * COUT,
            transcendentals=0,
            bytes_accessed=(N * CIN * HW + N * COUT * HW) * 4
                           + (COUT * CIN * KH * KW + COUT) * 4,
        ),
    )(x2d, w_flat, b_flat)

    return out2d.reshape(N, COUT, H, W)


if __name__ == "__main__":
    key = jax.random.PRNGKey(0)
    kx, kw_, kb = jax.random.split(key, 3)

    # Small shapes consistent with the module: batch=2, C=3, spatial=16.
    N, H, W = 2, 16, 16
    x = jax.random.normal(kx, (N, CIN, H, W), dtype=jnp.float32)

    # Deterministic Conv2d-style init: U(-bound, bound), bound = 1/sqrt(fan_in)
    fan_in = CIN * KH * KW
    bound = 1.0 / (fan_in ** 0.5)
    weight = jax.random.uniform(kw_, (COUT, CIN, KH, KW), jnp.float32,
                                minval=-bound, maxval=bound)
    bias = jax.random.uniform(kb, (COUT,), jnp.float32,
                              minval=-bound, maxval=bound)

    out = jax.block_until_ready(conv3x3_pallas(x, weight, bias))

    # Cross-check against XLA's conv for correctness.
    ref = jax.lax.conv_general_dilated(
        x, weight, window_strides=(1, 1), padding=((1, 1), (1, 1)),
        dimension_numbers=("NCHW", "OIHW", "NCHW"))
    ref = ref + bias[None, :, None, None]
    assert out.shape == (N, COUT, H, W)
    assert jnp.max(jnp.abs(out - ref)) < 1e-4

    print("KERNEL_OK")
</pallas_src>

<mosaic_0001>
module attributes {stable_mosaic.version = 11 : i64} {
  func.func @conv3x3_kernel(%arg0: memref<6x256xf32, #tpu.memory_space<vmem>>, %arg1: memref<81xf32, #tpu.memory_space<smem>>, %arg2: memref<3xf32, #tpu.memory_space<smem>>, %arg3: memref<6x256xf32, #tpu.memory_space<vmem>>) attributes {dimension_semantics = [], scalar_prefetch = 0 : i64, scratch_operands = 0 : i64, tpu.core_type = #tpu.core_type<tc>} {
    %c0 = arith.constant 0 : index
    %c0_0 = arith.constant 0 : index
    %0 = vector.load %arg0[%c0, %c0_0] : memref<6x256xf32, #tpu.memory_space<vmem>>, vector<6x256xf32>
    %1 = tpu.iota {dimensions = array<i32: 1>} : vector<6x256xi32>
    %c16_i32 = arith.constant 16 : i32
    %c0_i32 = arith.constant 0 : i32
    %2 = arith.cmpi eq, %c16_i32, %c0_i32 : i32
    %c1_i32 = arith.constant 1 : i32
    %3 = arith.select %2, %c1_i32, %c16_i32 : i32
    %4 = vector.broadcast %3 : i32 to vector<6x256xi32>
    %5 = arith.remsi %1, %4 : vector<6x256xi32>
    %c0_i32_1 = arith.constant 0 : i32
    %6 = vector.broadcast %c0_i32_1 : i32 to vector<6x256xi32>
    %7 = arith.cmpi ne, %5, %6 : vector<6x256xi32>
    %c0_i32_2 = arith.constant 0 : i32
    %8 = vector.broadcast %c0_i32_2 : i32 to vector<6x256xi32>
    %9 = arith.cmpi slt, %5, %8 : vector<6x256xi32>
    %c0_i32_3 = arith.constant 0 : i32
    %10 = arith.cmpi slt, %3, %c0_i32_3 : i32
    %11 = vector.broadcast %10 : i1 to vector<6x256xi1>
    %12 = vector.broadcast %11 : vector<6x256xi1> to vector<6x256xi1>
    %13 = arith.xori %9, %12 : vector<6x256xi1>
    %14 = arith.andi %13, %7 : vector<6x256xi1>
    %15 = vector.broadcast %3 : i32 to vector<6x256xi32>
    %16 = arith.addi %5, %15 : vector<6x256xi32>
    %17 = arith.select %14, %16, %5 : vector<6x256xi1>, vector<6x256xi32>
    %c17_i32 = arith.constant 17 : i32
    %18 = tpu.dynamic_rotate %0 by %c17_i32 dim 1 : vector<6x256xf32>, i32 -> vector<6x256xf32>
    %c16_i32_4 = arith.constant 16 : i32
    %19 = vector.broadcast %c16_i32_4 : i32 to vector<6x256xi32>
    %20 = arith.cmpi sge, %1, %19 : vector<6x256xi32>
    %c1_i32_5 = arith.constant 1 : i32
    %21 = vector.broadcast %c1_i32_5 : i32 to vector<6x256xi32>
    %22 = arith.cmpi sge, %17, %21 : vector<6x256xi32>
    %23 = arith.andi %20, %22 : vector<6x256xi1>
    %cst = arith.constant 0.000000e+00 : f32
    %24 = vector.broadcast %cst : f32 to vector<6x256xf32>
    %25 = arith.select %23, %18, %24 : vector<6x256xi1>, vector<6x256xf32>
    %c16_i32_6 = arith.constant 16 : i32
    %26 = tpu.dynamic_rotate %0 by %c16_i32_6 dim 1 : vector<6x256xf32>, i32 -> vector<6x256xf32>
    %c16_i32_7 = arith.constant 16 : i32
    %27 = vector.broadcast %c16_i32_7 : i32 to vector<6x256xi32>
    %28 = arith.cmpi sge, %1, %27 : vector<6x256xi32>
    %cst_8 = arith.constant 0.000000e+00 : f32
    %29 = vector.broadcast %cst_8 : f32 to vector<6x256xf32>
    %30 = arith.select %28, %26, %29 : vector<6x256xi1>, vector<6x256xf32>
    %c15_i32 = arith.constant 15 : i32
    %31 = tpu.dynamic_rotate %0 by %c15_i32 dim 1 : vector<6x256xf32>, i32 -> vector<6x256xf32>
    %c16_i32_9 = arith.constant 16 : i32
    %32 = vector.broadcast %c16_i32_9 : i32 to vector<6x256xi32>
    %33 = arith.cmpi sge, %1, %32 : vector<6x256xi32>
    %c15_i32_10 = arith.constant 15 : i32
    %34 = vector.broadcast %c15_i32_10 : i32 to vector<6x256xi32>
    %35 = arith.cmpi slt, %17, %34 : vector<6x256xi32>
    %36 = arith.andi %33, %35 : vector<6x256xi1>
    %cst_11 = arith.constant 0.000000e+00 : f32
    %37 = vector.broadcast %cst_11 : f32 to vector<6x256xf32>
    %38 = arith.select %36, %31, %37 : vector<6x256xi1>, vector<6x256xf32>
    %c1_i32_12 = arith.constant 1 : i32
    %39 = tpu.dynamic_rotate %0 by %c1_i32_12 dim 1 : vector<6x256xf32>, i32 -> vector<6x256xf32>
    %c1_i32_13 = arith.constant 1 : i32
    %40 = vector.broadcast %c1_i32_13 : i32 to vector<6x256xi32>
    %41 = arith.cmpi sge, %17, %40 : vector<6x256xi32>
    %cst_14 = arith.constant 0.000000e+00 : f32
    %42 = vector.broadcast %cst_14 : f32 to vector<6x256xf32>
    %43 = arith.select %41, %39, %42 : vector<6x256xi1>, vector<6x256xf32>
    %c255_i32 = arith.constant 255 : i32
    %44 = tpu.dynamic_rotate %0 by %c255_i32 dim 1 : vector<6x256xf32>, i32 -> vector<6x256xf32>
    %c15_i32_15 = arith.constant 15 : i32
    %45 = vector.broadcast %c15_i32_15 : i32 to vector<6x256xi32>
    %46 = arith.cmpi slt, %17, %45 : vector<6x256xi32>
    %cst_16 = arith.constant 0.000000e+00 : f32
    %47 = vector.broadcast %cst_16 : f32 to vector<6x256xf32>
    %48 = arith.select %46, %44, %47 : vector<6x256xi1>, vector<6x256xf32>
    %c241_i32 = arith.constant 241 : i32
    %49 = tpu.dynamic_rotate %0 by %c241_i32 dim 1 : vector<6x256xf32>, i32 -> vector<6x256xf32>
    %c240_i32 = arith.constant 240 : i32
    %50 = vector.broadcast %c240_i32 : i32 to vector<6x256xi32>
    %51 = arith.cmpi slt, %1, %50 : vector<6x256xi32>
    %c1_i32_17 = arith.constant 1 : i32
    %52 = vector.broadcast %c1_i32_17 : i32 to vector<6x256xi32>
    %53 = arith.cmpi sge, %17, %52 : vector<6x256xi32>
    %54 = arith.andi %51, %53 : vector<6x256xi1>
    %cst_18 = arith.constant 0.000000e+00 : f32
    %55 = vector.broadcast %cst_18 : f32 to vector<6x256xf32>
    %56 = arith.select %54, %49, %55 : vector<6x256xi1>, vector<6x256xf32>
    %c240_i32_19 = arith.constant 240 : i32
    %57 = tpu.dynamic_rotate %0 by %c240_i32_19 dim 1 : vector<6x256xf32>, i32 -> vector<6x256xf32>
    %c240_i32_20 = arith.constant 240 : i32
    %58 = vector.broadcast %c240_i32_20 : i32 to vector<6x256xi32>
    %59 = arith.cmpi slt, %1, %58 : vector<6x256xi32>
    %cst_21 = arith.constant 0.000000e+00 : f32
    %60 = vector.broadcast %cst_21 : f32 to vector<6x256xf32>
    %61 = arith.select %59, %57, %60 : vector<6x256xi1>, vector<6x256xf32>
    %c239_i32 = arith.constant 239 : i32
    %62 = tpu.dynamic_rotate %0 by %c239_i32 dim 1 : vector<6x256xf32>, i32 -> vector<6x256xf32>
    %c240_i32_22 = arith.constant 240 : i32
    %63 = vector.broadcast %c240_i32_22 : i32 to vector<6x256xi32>
    %64 = arith.cmpi slt, %1, %63 : vector<6x256xi32>
    %c15_i32_23 = arith.constant 15 : i32
    %65 = vector.broadcast %c15_i32_23 : i32 to vector<6x256xi32>
    %66 = arith.cmpi slt, %17, %65 : vector<6x256xi32>
    %67 = arith.andi %64, %66 : vector<6x256xi1>
    %cst_24 = arith.constant 0.000000e+00 : f32
    %68 = vector.broadcast %cst_24 : f32 to vector<6x256xf32>
    %69 = arith.select %67, %62, %68 : vector<6x256xi1>, vector<6x256xf32>
    %c0_25 = arith.constant 0 : index
    %70 = memref.load %arg1[%c0_25] : memref<81xf32, #tpu.memory_space<smem>>
    %c1 = arith.constant 1 : index
    %71 = memref.load %arg1[%c1] : memref<81xf32, #tpu.memory_space<smem>>
    %c2 = arith.constant 2 : index
    %72 = memref.load %arg1[%c2] : memref<81xf32, #tpu.memory_space<smem>>
    %c3 = arith.constant 3 : index
    %73 = memref.load %arg1[%c3] : memref<81xf32, #tpu.memory_space<smem>>
    %c4 = arith.constant 4 : index
    %74 = memref.load %arg1[%c4] : memref<81xf32, #tpu.memory_space<smem>>
    %c5 = arith.constant 5 : index
    %75 = memref.load %arg1[%c5] : memref<81xf32, #tpu.memory_space<smem>>
    %c6 = arith.constant 6 : index
    %76 = memref.load %arg1[%c6] : memref<81xf32, #tpu.memory_space<smem>>
    %c7 = arith.constant 7 : index
    %77 = memref.load %arg1[%c7] : memref<81xf32, #tpu.memory_space<smem>>
    %c8 = arith.constant 8 : index
    %78 = memref.load %arg1[%c8] : memref<81xf32, #tpu.memory_space<smem>>
    %c9 = arith.constant 9 : index
    %79 = memref.load %arg1[%c9] : memref<81xf32, #tpu.memory_space<smem>>
    %c10 = arith.constant 10 : index
    %80 = memref.load %arg1[%c10] : memref<81xf32, #tpu.memory_space<smem>>
    %c11 = arith.constant 11 : index
    %81 = memref.load %arg1[%c11] : memref<81xf32, #tpu.memory_space<smem>>
    %c12 = arith.constant 12 : index
    %82 = memref.load %arg1[%c12] : memref<81xf32, #tpu.memory_space<smem>>
    %c13 = arith.constant 13 : index
    %83 = memref.load %arg1[%c13] : memref<81xf32, #tpu.memory_space<smem>>
    %c14 = arith.constant 14 : index
    %84 = memref.load %arg1[%c14] : memref<81xf32, #tpu.memory_space<smem>>
    %c15 = arith.constant 15 : index
    %85 = memref.load %arg1[%c15] : memref<81xf32, #tpu.memory_space<smem>>
    %c16 = arith.constant 16 : index
    %86 = memref.load %arg1[%c16] : memref<81xf32, #tpu.memory_space<smem>>
    %c17 = arith.constant 17 : index
    %87 = memref.load %arg1[%c17] : memref<81xf32, #tpu.memory_space<smem>>
    %c18 = arith.constant 18 : index
    %88 = memref.load %arg1[%c18] : memref<81xf32, #tpu.memory_space<smem>>
    %c19 = arith.constant 19 : index
    %89 = memref.load %arg1[%c19] : memref<81xf32, #tpu.memory_space<smem>>
    %c20 = arith.constant 20 : index
    %90 = memref.load %arg1[%c20] : memref<81xf32, #tpu.memory_space<smem>>
    %c21 = arith.constant 21 : index
    %91 = memref.load %arg1[%c21] : memref<81xf32, #tpu.memory_space<smem>>
    %c22 = arith.constant 22 : index
    %92 = memref.load %arg1[%c22] : memref<81xf32, #tpu.memory_space<smem>>
    %c23 = arith.constant 23 : index
    %93 = memref.load %arg1[%c23] : memref<81xf32, #tpu.memory_space<smem>>
    %c24 = arith.constant 24 : index
    %94 = memref.load %arg1[%c24] : memref<81xf32, #tpu.memory_space<smem>>
    %c25 = arith.constant 25 : index
    %95 = memref.load %arg1[%c25] : memref<81xf32, #tpu.memory_space<smem>>
    %c26 = arith.constant 26 : index
    %96 = memref.load %arg1[%c26] : memref<81xf32, #tpu.memory_space<smem>>
    %c27 = arith.constant 27 : index
    %97 = memref.load %arg1[%c27] : memref<81xf32, #tpu.memory_space<smem>>
    %c28 = arith.constant 28 : index
    %98 = memref.load %arg1[%c28] : memref<81xf32, #tpu.memory_space<smem>>
    %c29 = arith.constant 29 : index
    %99 = memref.load %arg1[%c29] : memref<81xf32, #tpu.memory_space<smem>>
    %c30 = arith.constant 30 : index
    %100 = memref.load %arg1[%c30] : memref<81xf32, #tpu.memory_space<smem>>
    %c31 = arith.constant 31 : index
    %101 = memref.load %arg1[%c31] : memref<81xf32, #tpu.memory_space<smem>>
    %c32 = arith.constant 32 : index
    %102 = memref.load %arg1[%c32] : memref<81xf32, #tpu.memory_space<smem>>
    %c33 = arith.constant 33 : index
    %103 = memref.load %arg1[%c33] : memref<81xf32, #tpu.memory_space<smem>>
    %c34 = arith.constant 34 : index
    %104 = memref.load %arg1[%c34] : memref<81xf32, #tpu.memory_space<smem>>
    %c35 = arith.constant 35 : index
    %105 = memref.load %arg1[%c35] : memref<81xf32, #tpu.memory_space<smem>>
    %c36 = arith.constant 36 : index
    %106 = memref.load %arg1[%c36] : memref<81xf32, #tpu.memory_space<smem>>
    %c37 = arith.constant 37 : index
    %107 = memref.load %arg1[%c37] : memref<81xf32, #tpu.memory_space<smem>>
    %c38 = arith.constant 38 : index
    %108 = memref.load %arg1[%c38] : memref<81xf32, #tpu.memory_space<smem>>
    %c39 = arith.constant 39 : index
    %109 = memref.load %arg1[%c39] : memref<81xf32, #tpu.memory_space<smem>>
    %c40 = arith.constant 40 : index
    %110 = memref.load %arg1[%c40] : memref<81xf32, #tpu.memory_space<smem>>
    %c41 = arith.constant 41 : index
    %111 = memref.load %arg1[%c41] : memref<81xf32, #tpu.memory_space<smem>>
    %c42 = arith.constant 42 : index
    %112 = memref.load %arg1[%c42] : memref<81xf32, #tpu.memory_space<smem>>
    %c43 = arith.constant 43 : index
    %113 = memref.load %arg1[%c43] : memref<81xf32, #tpu.memory_space<smem>>
    %c44 = arith.constant 44 : index
    %114 = memref.load %arg1[%c44] : memref<81xf32, #tpu.memory_space<smem>>
    %c45 = arith.constant 45 : index
    %115 = memref.load %arg1[%c45] : memref<81xf32, #tpu.memory_space<smem>>
    %c46 = arith.constant 46 : index
    %116 = memref.load %arg1[%c46] : memref<81xf32, #tpu.memory_space<smem>>
    %c47 = arith.constant 47 : index
    %117 = memref.load %arg1[%c47] : memref<81xf32, #tpu.memory_space<smem>>
    %c48 = arith.constant 48 : index
    %118 = memref.load %arg1[%c48] : memref<81xf32, #tpu.memory_space<smem>>
    %c49 = arith.constant 49 : index
    %119 = memref.load %arg1[%c49] : memref<81xf32, #tpu.memory_space<smem>>
    %c50 = arith.constant 50 : index
    %120 = memref.load %arg1[%c50] : memref<81xf32, #tpu.memory_space<smem>>
    %c51 = arith.constant 51 : index
    %121 = memref.load %arg1[%c51] : memref<81xf32, #tpu.memory_space<smem>>
    %c52 = arith.constant 52 : index
    %122 = memref.load %arg1[%c52] : memref<81xf32, #tpu.memory_space<smem>>
    %c53 = arith.constant 53 : index
    %123 = memref.load %arg1[%c53] : memref<81xf32, #tpu.memory_space<smem>>
    %c54 = arith.constant 54 : index
    %124 = memref.load %arg1[%c54] : memref<81xf32, #tpu.memory_space<smem>>
    %c55 = arith.constant 55 : index
    %125 = memref.load %arg1[%c55] : memref<81xf32, #tpu.memory_space<smem>>
    %c56 = arith.constant 56 : index
    %126 = memref.load %arg1[%c56] : memref<81xf32, #tpu.memory_space<smem>>
    %c57 = arith.constant 57 : index
    %127 = memref.load %arg1[%c57] : memref<81xf32, #tpu.memory_space<smem>>
    %c58 = arith.constant 58 : index
    %128 = memref.load %arg1[%c58] : memref<81xf32, #tpu.memory_space<smem>>
    %c59 = arith.constant 59 : index
    %129 = memref.load %arg1[%c59] : memref<81xf32, #tpu.memory_space<smem>>
    %c60 = arith.constant 60 : index
    %130 = memref.load %arg1[%c60] : memref<81xf32, #tpu.memory_space<smem>>
    %c61 = arith.constant 61 : index
    %131 = memref.load %arg1[%c61] : memref<81xf32, #tpu.memory_space<smem>>
    %c62 = arith.constant 62 : index
    %132 = memref.load %arg1[%c62] : memref<81xf32, #tpu.memory_space<smem>>
    %c63 = arith.constant 63 : index
    %133 = memref.load %arg1[%c63] : memref<81xf32, #tpu.memory_space<smem>>
    %c64 = arith.constant 64 : index
    %134 = memref.load %arg1[%c64] : memref<81xf32, #tpu.memory_space<smem>>
    %c65 = arith.constant 65 : index
    %135 = memref.load %arg1[%c65] : memref<81xf32, #tpu.memory_space<smem>>
    %c66 = arith.constant 66 : index
    %136 = memref.load %arg1[%c66] : memref<81xf32, #tpu.memory_space<smem>>
    %c67 = arith.constant 67 : index
    %137 = memref.load %arg1[%c67] : memref<81xf32, #tpu.memory_space<smem>>
    %c68 = arith.constant 68 : index
    %138 = memref.load %arg1[%c68] : memref<81xf32, #tpu.memory_space<smem>>
    %c69 = arith.constant 69 : index
    %139 = memref.load %arg1[%c69] : memref<81xf32, #tpu.memory_space<smem>>
    %c70 = arith.constant 70 : index
    %140 = memref.load %arg1[%c70] : memref<81xf32, #tpu.memory_space<smem>>
    %c71 = arith.constant 71 : index
    %141 = memref.load %arg1[%c71] : memref<81xf32, #tpu.memory_space<smem>>
    %c72 = arith.constant 72 : index
    %142 = memref.load %arg1[%c72] : memref<81xf32, #tpu.memory_space<smem>>
    %c73 = arith.constant 73 : index
    %143 = memref.load %arg1[%c73] : memref<81xf32, #tpu.memory_space<smem>>
    %c74 = arith.constant 74 : index
    %144 = memref.load %arg1[%c74] : memref<81xf32, #tpu.memory_space<smem>>
    %c75 = arith.constant 75 : index
    %145 = memref.load %arg1[%c75] : memref<81xf32, #tpu.memory_space<smem>>
    %c76 = arith.constant 76 : index
    %146 = memref.load %arg1[%c76] : memref<81xf32, #tpu.memory_space<smem>>
    %c77 = arith.constant 77 : index
    %147 = memref.load %arg1[%c77] : memref<81xf32, #tpu.memory_space<smem>>
    %c78 = arith.constant 78 : index
    %148 = memref.load %arg1[%c78] : memref<81xf32, #tpu.memory_space<smem>>
    %c79 = arith.constant 79 : index
    %149 = memref.load %arg1[%c79] : memref<81xf32, #tpu.memory_space<smem>>
    %c80 = arith.constant 80 : index
    %150 = memref.load %arg1[%c80] : memref<81xf32, #tpu.memory_space<smem>>
    %c0_26 = arith.constant 0 : index
    %151 = memref.load %arg2[%c0_26] : memref<3xf32, #tpu.memory_space<smem>>
    %c1_27 = arith.constant 1 : index
    %152 = memref.load %arg2[%c1_27] : memref<3xf32, #tpu.memory_space<smem>>
    %c2_28 = arith.constant 2 : index
    %153 = memref.load %arg2[%c2_28] : memref<3xf32, #tpu.memory_space<smem>>
    %154 = vector.broadcast %151 : f32 to vector<1x256xf32>
    %155 = vector.broadcast %152 : f32 to vector<1x256xf32>
    %156 = vector.broadcast %153 : f32 to vector<1x256xf32>
    %157 = vector.extract_strided_slice %25 {offsets = [0, 0], sizes = [1, 256], strides = [1, 1]} : vector<6x256xf32> to vector<1x256xf32>
    %158 = vector.extract_strided_slice %30 {offsets = [0, 0], sizes = [1, 256], strides = [1, 1]} : vector<6x256xf32> to vector<1x256xf32>
    %159 = vector.extract_strided_slice %38 {offsets = [0, 0], sizes = [1, 256], strides = [1, 1]} : vector<6x256xf32> to vector<1x256xf32>
    %160 = vector.extract_strided_slice %43 {offsets = [0, 0], sizes = [1, 256], strides = [1, 1]} : vector<6x256xf32> to vector<1x256xf32>
    %161 = vector.extract_strided_slice %0 {offsets = [0, 0], sizes = [1, 256], strides = [1, 1]} : vector<6x256xf32> to vector<1x256xf32>
    %162 = vector.extract_strided_slice %48 {offsets = [0, 0], sizes = [1, 256], strides = [1, 1]} : vector<6x256xf32> to vector<1x256xf32>
    %163 = vector.extract_strided_slice %56 {offsets = [0, 0], sizes = [1, 256], strides = [1, 1]} : vector<6x256xf32> to vector<1x256xf32>
    %164 = vector.extract_strided_slice %61 {offsets = [0, 0], sizes = [1, 256], strides = [1, 1]} : vector<6x256xf32> to vector<1x256xf32>
    %165 = vector.extract_strided_slice %69 {offsets = [0, 0], sizes = [1, 256], strides = [1, 1]} : vector<6x256xf32> to vector<1x256xf32>
    %166 = vector.broadcast %70 : f32 to vector<1x256xf32>
    %167 = arith.mulf %166, %157 : vector<1x256xf32>
    %168 = arith.addf %154, %167 : vector<1x256xf32>
    %169 = vector.broadcast %71 : f32 to vector<1x256xf32>
    %170 = arith.mulf %169, %158 : vector<1x256xf32>
    %171 = arith.addf %168, %170 : vector<1x256xf32>
    %172 = vector.broadcast %72 : f32 to vector<1x256xf32>
    %173 = arith.mulf %172, %159 : vector<1x256xf32>
    %174 = arith.addf %171, %173 : vector<1x256xf32>
    %175 = vector.broadcast %73 : f32 to vector<1x256xf32>
    %176 = arith.mulf %175, %160 : vector<1x256xf32>
    %177 = arith.addf %174, %176 : vector<1x256xf32>
    %178 = vector.broadcast %74 : f32 to vector<1x256xf32>
    %179 = arith.mulf %178, %161 : vector<1x256xf32>
    %180 = arith.addf %177, %179 : vector<1x256xf32>
    %181 = vector.broadcast %75 : f32 to vector<1x256xf32>
    %182 = arith.mulf %181, %162 : vector<1x256xf32>
    %183 = arith.addf %180, %182 : vector<1x256xf32>
    %184 = vector.broadcast %76 : f32 to vector<1x256xf32>
    %185 = arith.mulf %184, %163 : vector<1x256xf32>
    %186 = arith.addf %183, %185 : vector<1x256xf32>
    %187 = vector.broadcast %77 : f32 to vector<1x256xf32>
    %188 = arith.mulf %187, %164 : vector<1x256xf32>
    %189 = arith.addf %186, %188 : vector<1x256xf32>
    %190 = vector.broadcast %78 : f32 to vector<1x256xf32>
    %191 = arith.mulf %190, %165 : vector<1x256xf32>
    %192 = arith.addf %189, %191 : vector<1x256xf32>
    %193 = vector.broadcast %97 : f32 to vector<1x256xf32>
    %194 = arith.mulf %193, %157 : vector<1x256xf32>
    %195 = arith.addf %155, %194 : vector<1x256xf32>
    %196 = vector.broadcast %98 : f32 to vector<1x256xf32>
    %197 = arith.mulf %196, %158 : vector<1x256xf32>
    %198 = arith.addf %195, %197 : vector<1x256xf32>
    %199 = vector.broadcast %99 : f32 to vector<1x256xf32>
    %200 = arith.mulf %199, %159 : vector<1x256xf32>
    %201 = arith.addf %198, %200 : vector<1x256xf32>
    %202 = vector.broadcast %100 : f32 to vector<1x256xf32>
    %203 = arith.mulf %202, %160 : vector<1x256xf32>
    %204 = arith.addf %201, %203 : vector<1x256xf32>
    %205 = vector.broadcast %101 : f32 to vector<1x256xf32>
    %206 = arith.mulf %205, %161 : vector<1x256xf32>
    %207 = arith.addf %204, %206 : vector<1x256xf32>
    %208 = vector.broadcast %102 : f32 to vector<1x256xf32>
    %209 = arith.mulf %208, %162 : vector<1x256xf32>
    %210 = arith.addf %207, %209 : vector<1x256xf32>
    %211 = vector.broadcast %103 : f32 to vector<1x256xf32>
    %212 = arith.mulf %211, %163 : vector<1x256xf32>
    %213 = arith.addf %210, %212 : vector<1x256xf32>
    %214 = vector.broadcast %104 : f32 to vector<1x256xf32>
    %215 = arith.mulf %214, %164 : vector<1x256xf32>
    %216 = arith.addf %213, %215 : vector<1x256xf32>
    %217 = vector.broadcast %105 : f32 to vector<1x256xf32>
    %218 = arith.mulf %217, %165 : vector<1x256xf32>
    %219 = arith.addf %216, %218 : vector<1x256xf32>
    %220 = vector.broadcast %124 : f32 to vector<1x256xf32>
    %221 = arith.mulf %220, %157 : vector<1x256xf32>
    %222 = arith.addf %156, %221 : vector<1x256xf32>
    %223 = vector.broadcast %125 : f32 to vector<1x256xf32>
    %224 = arith.mulf %223, %158 : vector<1x256xf32>
    %225 = arith.addf %222, %224 : vector<1x256xf32>
    %226 = vector.broadcast %126 : f32 to vector<1x256xf32>
    %227 = arith.mulf %226, %159 : vector<1x256xf32>
    %228 = arith.addf %225, %227 : vector<1x256xf32>
    %229 = vector.broadcast %127 : f32 to vector<1x256xf32>
    %230 = arith.mulf %229, %160 : vector<1x256xf32>
    %231 = arith.addf %228, %230 : vector<1x256xf32>
    %232 = vector.broadcast %128 : f32 to vector<1x256xf32>
    %233 = arith.mulf %232, %161 : vector<1x256xf32>
    %234 = arith.addf %231, %233 : vector<1x256xf32>
    %235 = vector.broadcast %129 : f32 to vector<1x256xf32>
    %236 = arith.mulf %235, %162 : vector<1x256xf32>
    %237 = arith.addf %234, %236 : vector<1x256xf32>
    %238 = vector.broadcast %130 : f32 to vector<1x256xf32>
    %239 = arith.mulf %238, %163 : vector<1x256xf32>
    %240 = arith.addf %237, %239 : vector<1x256xf32>
    %241 = vector.broadcast %131 : f32 to vector<1x256xf32>
    %242 = arith.mulf %241, %164 : vector<1x256xf32>
    %243 = arith.addf %240, %242 : vector<1x256xf32>
    %244 = vector.broadcast %132 : f32 to vector<1x256xf32>
    %245 = arith.mulf %244, %165 : vector<1x256xf32>
    %246 = arith.addf %243, %245 : vector<1x256xf32>
    %247 = vector.extract_strided_slice %25 {offsets = [1, 0], sizes = [1, 256], strides = [1, 1]} : vector<6x256xf32> to vector<1x256xf32>
    %248 = vector.extract_strided_slice %30 {offsets = [1, 0], sizes = [1, 256], strides = [1, 1]} : vector<6x256xf32> to vector<1x256xf32>
    %249 = vector.extract_strided_slice %38 {offsets = [1, 0], sizes = [1, 256], strides = [1, 1]} : vector<6x256xf32> to vector<1x256xf32>
    %250 = vector.extract_strided_slice %43 {offsets = [1, 0], sizes = [1, 256], strides = [1, 1]} : vector<6x256xf32> to vector<1x256xf32>
    %251 = vector.extract_strided_slice %0 {offsets = [1, 0], sizes = [1, 256], strides = [1, 1]} : vector<6x256xf32> to vector<1x256xf32>
    %252 = vector.extract_strided_slice %48 {offsets = [1, 0], sizes = [1, 256], strides = [1, 1]} : vector<6x256xf32> to vector<1x256xf32>
    %253 = vector.extract_strided_slice %56 {offsets = [1, 0], sizes = [1, 256], strides = [1, 1]} : vector<6x256xf32> to vector<1x256xf32>
    %254 = vector.extract_strided_slice %61 {offsets = [1, 0], sizes = [1, 256], strides = [1, 1]} : vector<6x256xf32> to vector<1x256xf32>
    %255 = vector.extract_strided_slice %69 {offsets = [1, 0], sizes = [1, 256], strides = [1, 1]} : vector<6x256xf32> to vector<1x256xf32>
    %256 = vector.broadcast %79 : f32 to vector<1x256xf32>
    %257 = arith.mulf %256, %247 : vector<1x256xf32>
    %258 = arith.addf %192, %257 : vector<1x256xf32>
    %259 = vector.broadcast %80 : f32 to vector<1x256xf32>
    %260 = arith.mulf %259, %248 : vector<1x256xf32>
    %261 = arith.addf %258, %260 : vector<1x256xf32>
    %262 = vector.broadcast %81 : f32 to vector<1x256xf32>
    %263 = arith.mulf %262, %249 : vector<1x256xf32>
    %264 = arith.addf %261, %263 : vector<1x256xf32>
    %265 = vector.broadcast %82 : f32 to vector<1x256xf32>
    %266 = arith.mulf %265, %250 : vector<1x256xf32>
    %267 = arith.addf %264, %266 : vector<1x256xf32>
    %268 = vector.broadcast %83 : f32 to vector<1x256xf32>
    %269 = arith.mulf %268, %251 : vector<1x256xf32>
    %270 = arith.addf %267, %269 : vector<1x256xf32>
    %271 = vector.broadcast %84 : f32 to vector<1x256xf32>
    %272 = arith.mulf %271, %252 : vector<1x256xf32>
    %273 = arith.addf %270, %272 : vector<1x256xf32>
    %274 = vector.broadcast %85 : f32 to vector<1x256xf32>
    %275 = arith.mulf %274, %253 : vector<1x256xf32>
    %276 = arith.addf %273, %275 : vector<1x256xf32>
    %277 = vector.broadcast %86 : f32 to vector<1x256xf32>
    %278 = arith.mulf %277, %254 : vector<1x256xf32>
    %279 = arith.addf %276, %278 : vector<1x256xf32>
    %280 = vector.broadcast %87 : f32 to vector<1x256xf32>
    %281 = arith.mulf %280, %255 : vector<1x256xf32>
    %282 = arith.addf %279, %281 : vector<1x256xf32>
    %283 = vector.broadcast %106 : f32 to vector<1x256xf32>
    %284 = arith.mulf %283, %247 : vector<1x256xf32>
    %285 = arith.addf %219, %284 : vector<1x256xf32>
    %286 = vector.broadcast %107 : f32 to vector<1x256xf32>
    %287 = arith.mulf %286, %248 : vector<1x256xf32>
    %288 = arith.addf %285, %287 : vector<1x256xf32>
    %289 = vector.broadcast %108 : f32 to vector<1x256xf32>
    %290 = arith.mulf %289, %249 : vector<1x256xf32>
    %291 = arith.addf %288, %290 : vector<1x256xf32>
    %292 = vector.broadcast %109 : f32 to vector<1x256xf32>
    %293 = arith.mulf %292, %250 : vector<1x256xf32>
    %294 = arith.addf %291, %293 : vector<1x256xf32>
    %295 = vector.broadcast %110 : f32 to vector<1x256xf32>
    %296 = arith.mulf %295, %251 : vector<1x256xf32>
    %297 = arith.addf %294, %296 : vector<1x256xf32>
    %298 = vector.broadcast %111 : f32 to vector<1x256xf32>
    %299 = arith.mulf %298, %252 : vector<1x256xf32>
    %300 = arith.addf %297, %299 : vector<1x256xf32>
    %301 = vector.broadcast %112 : f32 to vector<1x256xf32>
    %302 = arith.mulf %301, %253 : vector<1x256xf32>
    %303 = arith.addf %300, %302 : vector<1x256xf32>
    %304 = vector.broadcast %113 : f32 to vector<1x256xf32>
    %305 = arith.mulf %304, %254 : vector<1x256xf32>
    %306 = arith.addf %303, %305 : vector<1x256xf32>
    %307 = vector.broadcast %114 : f32 to vector<1x256xf32>
    %308 = arith.mulf %307, %255 : vector<1x256xf32>
    %309 = arith.addf %306, %308 : vector<1x256xf32>
    %310 = vector.broadcast %133 : f32 to vector<1x256xf32>
    %311 = arith.mulf %310, %247 : vector<1x256xf32>
    %312 = arith.addf %246, %311 : vector<1x256xf32>
    %313 = vector.broadcast %134 : f32 to vector<1x256xf32>
    %314 = arith.mulf %313, %248 : vector<1x256xf32>
    %315 = arith.addf %312, %314 : vector<1x256xf32>
    %316 = vector.broadcast %135 : f32 to vector<1x256xf32>
    %317 = arith.mulf %316, %249 : vector<1x256xf32>
    %318 = arith.addf %315, %317 : vector<1x256xf32>
    %319 = vector.broadcast %136 : f32 to vector<1x256xf32>
    %320 = arith.mulf %319, %250 : vector<1x256xf32>
    %321 = arith.addf %318, %320 : vector<1x256xf32>
    %322 = vector.broadcast %137 : f32 to vector<1x256xf32>
    %323 = arith.mulf %322, %251 : vector<1x256xf32>
    %324 = arith.addf %321, %323 : vector<1x256xf32>
    %325 = vector.broadcast %138 : f32 to vector<1x256xf32>
    %326 = arith.mulf %325, %252 : vector<1x256xf32>
    %327 = arith.addf %324, %326 : vector<1x256xf32>
    %328 = vector.broadcast %139 : f32 to vector<1x256xf32>
    %329 = arith.mulf %328, %253 : vector<1x256xf32>
    %330 = arith.addf %327, %329 : vector<1x256xf32>
    %331 = vector.broadcast %140 : f32 to vector<1x256xf32>
    %332 = arith.mulf %331, %254 : vector<1x256xf32>
    %333 = arith.addf %330, %332 : vector<1x256xf32>
    %334 = vector.broadcast %141 : f32 to vector<1x256xf32>
    %335 = arith.mulf %334, %255 : vector<1x256xf32>
    %336 = arith.addf %333, %335 : vector<1x256xf32>
    %337 = vector.extract_strided_slice %25 {offsets = [2, 0], sizes = [1, 256], strides = [1, 1]} : vector<6x256xf32> to vector<1x256xf32>
    %338 = vector.extract_strided_slice %30 {offsets = [2, 0], sizes = [1, 256], strides = [1, 1]} : vector<6x256xf32> to vector<1x256xf32>
    %339 = vector.extract_strided_slice %38 {offsets = [2, 0], sizes = [1, 256], strides = [1, 1]} : vector<6x256xf32> to vector<1x256xf32>
    %340 = vector.extract_strided_slice %43 {offsets = [2, 0], sizes = [1, 256], strides = [1, 1]} : vector<6x256xf32> to vector<1x256xf32>
    %341 = vector.extract_strided_slice %0 {offsets = [2, 0], sizes = [1, 256], strides = [1, 1]} : vector<6x256xf32> to vector<1x256xf32>
    %342 = vector.extract_strided_slice %48 {offsets = [2, 0], sizes = [1, 256], strides = [1, 1]} : vector<6x256xf32> to vector<1x256xf32>
    %343 = vector.extract_strided_slice %56 {offsets = [2, 0], sizes = [1, 256], strides = [1, 1]} : vector<6x256xf32> to vector<1x256xf32>
    %344 = vector.extract_strided_slice %61 {offsets = [2, 0], sizes = [1, 256], strides = [1, 1]} : vector<6x256xf32> to vector<1x256xf32>
    %345 = vector.extract_strided_slice %69 {offsets = [2, 0], sizes = [1, 256], strides = [1, 1]} : vector<6x256xf32> to vector<1x256xf32>
    %346 = vector.broadcast %88 : f32 to vector<1x256xf32>
    %347 = arith.mulf %346, %337 : vector<1x256xf32>
    %348 = arith.addf %282, %347 : vector<1x256xf32>
    %349 = vector.broadcast %89 : f32 to vector<1x256xf32>
    %350 = arith.mulf %349, %338 : vector<1x256xf32>
    %351 = arith.addf %348, %350 : vector<1x256xf32>
    %352 = vector.broadcast %90 : f32 to vector<1x256xf32>
    %353 = arith.mulf %352, %339 : vector<1x256xf32>
    %354 = arith.addf %351, %353 : vector<1x256xf32>
    %355 = vector.broadcast %91 : f32 to vector<1x256xf32>
    %356 = arith.mulf %355, %340 : vector<1x256xf32>
    %357 = arith.addf %354, %356 : vector<1x256xf32>
    %358 = vector.broadcast %92 : f32 to vector<1x256xf32>
    %359 = arith.mulf %358, %341 : vector<1x256xf32>
    %360 = arith.addf %357, %359 : vector<1x256xf32>
    %361 = vector.broadcast %93 : f32 to vector<1x256xf32>
    %362 = arith.mulf %361, %342 : vector<1x256xf32>
    %363 = arith.addf %360, %362 : vector<1x256xf32>
    %364 = vector.broadcast %94 : f32 to vector<1x256xf32>
    %365 = arith.mulf %364, %343 : vector<1x256xf32>
    %366 = arith.addf %363, %365 : vector<1x256xf32>
    %367 = vector.broadcast %95 : f32 to vector<1x256xf32>
    %368 = arith.mulf %367, %344 : vector<1x256xf32>
    %369 = arith.addf %366, %368 : vector<1x256xf32>
    %370 = vector.broadcast %96 : f32 to vector<1x256xf32>
    %371 = arith.mulf %370, %345 : vector<1x256xf32>
    %372 = arith.addf %369, %371 : vector<1x256xf32>
    %373 = vector.broadcast %115 : f32 to vector<1x256xf32>
    %374 = arith.mulf %373, %337 : vector<1x256xf32>
    %375 = arith.addf %309, %374 : vector<1x256xf32>
    %376 = vector.broadcast %116 : f32 to vector<1x256xf32>
    %377 = arith.mulf %376, %338 : vector<1x256xf32>
    %378 = arith.addf %375, %377 : vector<1x256xf32>
    %379 = vector.broadcast %117 : f32 to vector<1x256xf32>
    %380 = arith.mulf %379, %339 : vector<1x256xf32>
    %381 = arith.addf %378, %380 : vector<1x256xf32>
    %382 = vector.broadcast %118 : f32 to vector<1x256xf32>
    %383 = arith.mulf %382, %340 : vector<1x256xf32>
    %384 = arith.addf %381, %383 : vector<1x256xf32>
    %385 = vector.broadcast %119 : f32 to vector<1x256xf32>
    %386 = arith.mulf %385, %341 : vector<1x256xf32>
    %387 = arith.addf %384, %386 : vector<1x256xf32>
    %388 = vector.broadcast %120 : f32 to vector<1x256xf32>
    %389 = arith.mulf %388, %342 : vector<1x256xf32>
    %390 = arith.addf %387, %389 : vector<1x256xf32>
    %391 = vector.broadcast %121 : f32 to vector<1x256xf32>
    %392 = arith.mulf %391, %343 : vector<1x256xf32>
    %393 = arith.addf %390, %392 : vector<1x256xf32>
    %394 = vector.broadcast %122 : f32 to vector<1x256xf32>
    %395 = arith.mulf %394, %344 : vector<1x256xf32>
    %396 = arith.addf %393, %395 : vector<1x256xf32>
    %397 = vector.broadcast %123 : f32 to vector<1x256xf32>
    %398 = arith.mulf %397, %345 : vector<1x256xf32>
    %399 = arith.addf %396, %398 : vector<1x256xf32>
    %400 = vector.broadcast %142 : f32 to vector<1x256xf32>
    %401 = arith.mulf %400, %337 : vector<1x256xf32>
    %402 = arith.addf %336, %401 : vector<1x256xf32>
    %403 = vector.broadcast %143 : f32 to vector<1x256xf32>
    %404 = arith.mulf %403, %338 : vector<1x256xf32>
    %405 = arith.addf %402, %404 : vector<1x256xf32>
    %406 = vector.broadcast %144 : f32 to vector<1x256xf32>
    %407 = arith.mulf %406, %339 : vector<1x256xf32>
    %408 = arith.addf %405, %407 : vector<1x256xf32>
    %409 = vector.broadcast %145 : f32 to vector<1x256xf32>
    %410 = arith.mulf %409, %340 : vector<1x256xf32>
    %411 = arith.addf %408, %410 : vector<1x256xf32>
    %412 = vector.broadcast %146 : f32 to vector<1x256xf32>
    %413 = arith.mulf %412, %341 : vector<1x256xf32>
    %414 = arith.addf %411, %413 : vector<1x256xf32>
    %415 = vector.broadcast %147 : f32 to vector<1x256xf32>
    %416 = arith.mulf %415, %342 : vector<1x256xf32>
    %417 = arith.addf %414, %416 : vector<1x256xf32>
    %418 = vector.broadcast %148 : f32 to vector<1x256xf32>
    %419 = arith.mulf %418, %343 : vector<1x256xf32>
    %420 = arith.addf %417, %419 : vector<1x256xf32>
    %421 = vector.broadcast %149 : f32 to vector<1x256xf32>
    %422 = arith.mulf %421, %344 : vector<1x256xf32>
    %423 = arith.addf %420, %422 : vector<1x256xf32>
    %424 = vector.broadcast %150 : f32 to vector<1x256xf32>
    %425 = arith.mulf %424, %345 : vector<1x256xf32>
    %426 = arith.addf %423, %425 : vector<1x256xf32>
    %c0_29 = arith.constant 0 : index
    %c0_30 = arith.constant 0 : index
    %427 = vector.load %arg3[%c0_29, %c0_30] : memref<6x256xf32, #tpu.memory_space<vmem>>, vector<1x256xf32>
    tpu.vector_store %arg3[%c0_29, %c0_30], %372 {strides = array<i32>} : memref<6x256xf32, #tpu.memory_space<vmem>>, vector<1x256xf32>,
    %c1_31 = arith.constant 1 : index
    %c0_32 = arith.constant 0 : index
    %428 = vector.load %arg3[%c1_31, %c0_32] : memref<6x256xf32, #tpu.memory_space<vmem>>, vector<1x256xf32>
    tpu.vector_store %arg3[%c1_31, %c0_32], %399 {strides = array<i32>} : memref<6x256xf32, #tpu.memory_space<vmem>>, vector<1x256xf32>,
    %c2_33 = arith.constant 2 : index
    %c0_34 = arith.constant 0 : index
    %429 = vector.load %arg3[%c2_33, %c0_34] : memref<6x256xf32, #tpu.memory_space<vmem>>, vector<1x256xf32>
    tpu.vector_store %arg3[%c2_33, %c0_34], %426 {strides = array<i32>} : memref<6x256xf32, #tpu.memory_space<vmem>>, vector<1x256xf32>,
    %430 = vector.broadcast %151 : f32 to vector<1x256xf32>
    %431 = vector.broadcast %152 : f32 to vector<1x256xf32>
    %432 = vector.broadcast %153 : f32 to vector<1x256xf32>
    %433 = vector.extract_strided_slice %25 {offsets = [3, 0], sizes = [1, 256], strides = [1, 1]} : vector<6x256xf32> to vector<1x256xf32>
    %434 = vector.extract_strided_slice %30 {offsets = [3, 0], sizes = [1, 256], strides = [1, 1]} : vector<6x256xf32> to vector<1x256xf32>
    %435 = vector.extract_strided_slice %38 {offsets = [3, 0], sizes = [1, 256], strides = [1, 1]} : vector<6x256xf32> to vector<1x256xf32>
    %436 = vector.extract_strided_slice %43 {offsets = [3, 0], sizes = [1, 256], strides = [1, 1]} : vector<6x256xf32> to vector<1x256xf32>
    %437 = vector.extract_strided_slice %0 {offsets = [3, 0], sizes = [1, 256], strides = [1, 1]} : vector<6x256xf32> to vector<1x256xf32>
    %438 = vector.extract_strided_slice %48 {offsets = [3, 0], sizes = [1, 256], strides = [1, 1]} : vector<6x256xf32> to vector<1x256xf32>
    %439 = vector.extract_strided_slice %56 {offsets = [3, 0], sizes = [1, 256], strides = [1, 1]} : vector<6x256xf32> to vector<1x256xf32>
    %440 = vector.extract_strided_slice %61 {offsets = [3, 0], sizes = [1, 256], strides = [1, 1]} : vector<6x256xf32> to vector<1x256xf32>
    %441 = vector.extract_strided_slice %69 {offsets = [3, 0], sizes = [1, 256], strides = [1, 1]} : vector<6x256xf32> to vector<1x256xf32>
    %442 = vector.broadcast %70 : f32 to vector<1x256xf32>
    %443 = arith.mulf %442, %433 : vector<1x256xf32>
    %444 = arith.addf %430, %443 : vector<1x256xf32>
    %445 = vector.broadcast %71 : f32 to vector<1x256xf32>
    %446 = arith.mulf %445, %434 : vector<1x256xf32>
    %447 = arith.addf %444, %446 : vector<1x256xf32>
    %448 = vector.broadcast %72 : f32 to vector<1x256xf32>
    %449 = arith.mulf %448, %435 : vector<1x256xf32>
    %450 = arith.addf %447, %449 : vector<1x256xf32>
    %451 = vector.broadcast %73 : f32 to vector<1x256xf32>
    %452 = arith.mulf %451, %436 : vector<1x256xf32>
    %453 = arith.addf %450, %452 : vector<1x256xf32>
    %454 = vector.broadcast %74 : f32 to vector<1x256xf32>
    %455 = arith.mulf %454, %437 : vector<1x256xf32>
    %456 = arith.addf %453, %455 : vector<1x256xf32>
    %457 = vector.broadcast %75 : f32 to vector<1x256xf32>
    %458 = arith.mulf %457, %438 : vector<1x256xf32>
    %459 = arith.addf %456, %458 : vector<1x256xf32>
    %460 = vector.broadcast %76 : f32 to vector<1x256xf32>
    %461 = arith.mulf %460, %439 : vector<1x256xf32>
    %462 = arith.addf %459, %461 : vector<1x256xf32>
    %463 = vector.broadcast %77 : f32 to vector<1x256xf32>
    %464 = arith.mulf %463, %440 : vector<1x256xf32>
    %465 = arith.addf %462, %464 : vector<1x256xf32>
    %466 = vector.broadcast %78 : f32 to vector<1x256xf32>
    %467 = arith.mulf %466, %441 : vector<1x256xf32>
    %468 = arith.addf %465, %467 : vector<1x256xf32>
    %469 = vector.broadcast %97 : f32 to vector<1x256xf32>
    %470 = arith.mulf %469, %433 : vector<1x256xf32>
    %471 = arith.addf %431, %470 : vector<1x256xf32>
    %472 = vector.broadcast %98 : f32 to vector<1x256xf32>
    %473 = arith.mulf %472, %434 : vector<1x256xf32>
    %474 = arith.addf %471, %473 : vector<1x256xf32>
    %475 = vector.broadcast %99 : f32 to vector<1x256xf32>
    %476 = arith.mulf %475, %435 : vector<1x256xf32>
    %477 = arith.addf %474, %476 : vector<1x256xf32>
    %478 = vector.broadcast %100 : f32 to vector<1x256xf32>
    %479 = arith.mulf %478, %436 : vector<1x256xf32>
    %480 = arith.addf %477, %479 : vector<1x256xf32>
    %481 = vector.broadcast %101 : f32 to vector<1x256xf32>
    %482 = arith.mulf %481, %437 : vector<1x256xf32>
    %483 = arith.addf %480, %482 : vector<1x256xf32>
    %484 = vector.broadcast %102 : f32 to vector<1x256xf32>
    %485 = arith.mulf %484, %438 : vector<1x256xf32>
    %486 = arith.addf %483, %485 : vector<1x256xf32>
    %487 = vector.broadcast %103 : f32 to vector<1x256xf32>
    %488 = arith.mulf %487, %439 : vector<1x256xf32>
    %489 = arith.addf %486, %488 : vector<1x256xf32>
    %490 = vector.broadcast %104 : f32 to vector<1x256xf32>
    %491 = arith.mulf %490, %440 : vector<1x256xf32>
    %492 = arith.addf %489, %491 : vector<1x256xf32>
    %493 = vector.broadcast %105 : f32 to vector<1x256xf32>
    %494 = arith.mulf %493, %441 : vector<1x256xf32>
    %495 = arith.addf %492, %494 : vector<1x256xf32>
    %496 = vector.broadcast %124 : f32 to vector<1x256xf32>
    %497 = arith.mulf %496, %433 : vector<1x256xf32>
    %498 = arith.addf %432, %497 : vector<1x256xf32>
    %499 = vector.broadcast %125 : f32 to vector<1x256xf32>
    %500 = arith.mulf %499, %434 : vector<1x256xf32>
    %501 = arith.addf %498, %500 : vector<1x256xf32>
    %502 = vector.broadcast %126 : f32 to vector<1x256xf32>
    %503 = arith.mulf %502, %435 : vector<1x256xf32>
    %504 = arith.addf %501, %503 : vector<1x256xf32>
    %505 = vector.broadcast %127 : f32 to vector<1x256xf32>
    %506 = arith.mulf %505, %436 : vector<1x256xf32>
    %507 = arith.addf %504, %506 : vector<1x256xf32>
    %508 = vector.broadcast %128 : f32 to vector<1x256xf32>
    %509 = arith.mulf %508, %437 : vector<1x256xf32>
    %510 = arith.addf %507, %509 : vector<1x256xf32>
    %511 = vector.broadcast %129 : f32 to vector<1x256xf32>
    %512 = arith.mulf %511, %438 : vector<1x256xf32>
    %513 = arith.addf %510, %512 : vector<1x256xf32>
    %514 = vector.broadcast %130 : f32 to vector<1x256xf32>
    %515 = arith.mulf %514, %439 : vector<1x256xf32>
    %516 = arith.addf %513, %515 : vector<1x256xf32>
    %517 = vector.broadcast %131 : f32 to vector<1x256xf32>
    %518 = arith.mulf %517, %440 : vector<1x256xf32>
    %519 = arith.addf %516, %518 : vector<1x256xf32>
    %520 = vector.broadcast %132 : f32 to vector<1x256xf32>
    %521 = arith.mulf %520, %441 : vector<1x256xf32>
    %522 = arith.addf %519, %521 : vector<1x256xf32>
    %523 = vector.extract_strided_slice %25 {offsets = [4, 0], sizes = [1, 256], strides = [1, 1]} : vector<6x256xf32> to vector<1x256xf32>
    %524 = vector.extract_strided_slice %30 {offsets = [4, 0], sizes = [1, 256], strides = [1, 1]} : vector<6x256xf32> to vector<1x256xf32>
    %525 = vector.extract_strided_slice %38 {offsets = [4, 0], sizes = [1, 256], strides = [1, 1]} : vector<6x256xf32> to vector<1x256xf32>
    %526 = vector.extract_strided_slice %43 {offsets = [4, 0], sizes = [1, 256], strides = [1, 1]} : vector<6x256xf32> to vector<1x256xf32>
    %527 = vector.extract_strided_slice %0 {offsets = [4, 0], sizes = [1, 256], strides = [1, 1]} : vector<6x256xf32> to vector<1x256xf32>
    %528 = vector.extract_strided_slice %48 {offsets = [4, 0], sizes = [1, 256], strides = [1, 1]} : vector<6x256xf32> to vector<1x256xf32>
    %529 = vector.extract_strided_slice %56 {offsets = [4, 0], sizes = [1, 256], strides = [1, 1]} : vector<6x256xf32> to vector<1x256xf32>
    %530 = vector.extract_strided_slice %61 {offsets = [4, 0], sizes = [1, 256], strides = [1, 1]} : vector<6x256xf32> to vector<1x256xf32>
    %531 = vector.extract_strided_slice %69 {offsets = [4, 0], sizes = [1, 256], strides = [1, 1]} : vector<6x256xf32> to vector<1x256xf32>
    %532 = vector.broadcast %79 : f32 to vector<1x256xf32>
    %533 = arith.mulf %532, %523 : vector<1x256xf32>
    %534 = arith.addf %468, %533 : vector<1x256xf32>
    %535 = vector.broadcast %80 : f32 to vector<1x256xf32>
    %536 = arith.mulf %535, %524 : vector<1x256xf32>
    %537 = arith.addf %534, %536 : vector<1x256xf32>
    %538 = vector.broadcast %81 : f32 to vector<1x256xf32>
    %539 = arith.mulf %538, %525 : vector<1x256xf32>
    %540 = arith.addf %537, %539 : vector<1x256xf32>
    %541 = vector.broadcast %82 : f32 to vector<1x256xf32>
    %542 = arith.mulf %541, %526 : vector<1x256xf32>
    %543 = arith.addf %540, %542 : vector<1x256xf32>
    %544 = vector.broadcast %83 : f32 to vector<1x256xf32>
    %545 = arith.mulf %544, %527 : vector<1x256xf32>
    %546 = arith.addf %543, %545 : vector<1x256xf32>
    %547 = vector.broadcast %84 : f32 to vector<1x256xf32>
    %548 = arith.mulf %547, %528 : vector<1x256xf32>
    %549 = arith.addf %546, %548 : vector<1x256xf32>
    %550 = vector.broadcast %85 : f32 to vector<1x256xf32>
    %551 = arith.mulf %550, %529 : vector<1x256xf32>
    %552 = arith.addf %549, %551 : vector<1x256xf32>
    %553 = vector.broadcast %86 : f32 to vector<1x256xf32>
    %554 = arith.mulf %553, %530 : vector<1x256xf32>
    %555 = arith.addf %552, %554 : vector<1x256xf32>
    %556 = vector.broadcast %87 : f32 to vector<1x256xf32>
    %557 = arith.mulf %556, %531 : vector<1x256xf32>
    %558 = arith.addf %555, %557 : vector<1x256xf32>
    %559 = vector.broadcast %106 : f32 to vector<1x256xf32>
    %560 = arith.mulf %559, %523 : vector<1x256xf32>
    %561 = arith.addf %495, %560 : vector<1x256xf32>
    %562 = vector.broadcast %107 : f32 to vector<1x256xf32>
    %563 = arith.mulf %562, %524 : vector<1x256xf32>
    %564 = arith.addf %561, %563 : vector<1x256xf32>
    %565 = vector.broadcast %108 : f32 to vector<1x256xf32>
    %566 = arith.mulf %565, %525 : vector<1x256xf32>
    %567 = arith.addf %564, %566 : vector<1x256xf32>
    %568 = vector.broadcast %109 : f32 to vector<1x256xf32>
    %569 = arith.mulf %568, %526 : vector<1x256xf32>
    %570 = arith.addf %567, %569 : vector<1x256xf32>
    %571 = vector.broadcast %110 : f32 to vector<1x256xf32>
    %572 = arith.mulf %571, %527 : vector<1x256xf32>
    %573 = arith.addf %570, %572 : vector<1x256xf32>
    %574 = vector.broadcast %111 : f32 to vector<1x256xf32>
    %575 = arith.mulf %574, %528 : vector<1x256xf32>
    %576 = arith.addf %573, %575 : vector<1x256xf32>
    %577 = vector.broadcast %112 : f32 to vector<1x256xf32>
    %578 = arith.mulf %577, %529 : vector<1x256xf32>
    %579 = arith.addf %576, %578 : vector<1x256xf32>
    %580 = vector.broadcast %113 : f32 to vector<1x256xf32>
    %581 = arith.mulf %580, %530 : vector<1x256xf32>
    %582 = arith.addf %579, %581 : vector<1x256xf32>
    %583 = vector.broadcast %114 : f32 to vector<1x256xf32>
    %584 = arith.mulf %583, %531 : vector<1x256xf32>
    %585 = arith.addf %582, %584 : vector<1x256xf32>
    %586 = vector.broadcast %133 : f32 to vector<1x256xf32>
    %587 = arith.mulf %586, %523 : vector<1x256xf32>
    %588 = arith.addf %522, %587 : vector<1x256xf32>
    %589 = vector.broadcast %134 : f32 to vector<1x256xf32>
    %590 = arith.mulf %589, %524 : vector<1x256xf32>
    %591 = arith.addf %588, %590 : vector<1x256xf32>
    %592 = vector.broadcast %135 : f32 to vector<1x256xf32>
    %593 = arith.mulf %592, %525 : vector<1x256xf32>
    %594 = arith.addf %591, %593 : vector<1x256xf32>
    %595 = vector.broadcast %136 : f32 to vector<1x256xf32>
    %596 = arith.mulf %595, %526 : vector<1x256xf32>
    %597 = arith.addf %594, %596 : vector<1x256xf32>
    %598 = vector.broadcast %137 : f32 to vector<1x256xf32>
    %599 = arith.mulf %598, %527 : vector<1x256xf32>
    %600 = arith.addf %597, %599 : vector<1x256xf32>
    %601 = vector.broadcast %138 : f32 to vector<1x256xf32>
    %602 = arith.mulf %601, %528 : vector<1x256xf32>
    %603 = arith.addf %600, %602 : vector<1x256xf32>
    %604 = vector.broadcast %139 : f32 to vector<1x256xf32>
    %605 = arith.mulf %604, %529 : vector<1x256xf32>
    %606 = arith.addf %603, %605 : vector<1x256xf32>
    %607 = vector.broadcast %140 : f32 to vector<1x256xf32>
    %608 = arith.mulf %607, %530 : vector<1x256xf32>
    %609 = arith.addf %606, %608 : vector<1x256xf32>
    %610 = vector.broadcast %141 : f32 to vector<1x256xf32>
    %611 = arith.mulf %610, %531 : vector<1x256xf32>
    %612 = arith.addf %609, %611 : vector<1x256xf32>
    %613 = vector.extract_strided_slice %25 {offsets = [5, 0], sizes = [1, 256], strides = [1, 1]} : vector<6x256xf32> to vector<1x256xf32>
    %614 = vector.extract_strided_slice %30 {offsets = [5, 0], sizes = [1, 256], strides = [1, 1]} : vector<6x256xf32> to vector<1x256xf32>
    %615 = vector.extract_strided_slice %38 {offsets = [5, 0], sizes = [1, 256], strides = [1, 1]} : vector<6x256xf32> to vector<1x256xf32>
    %616 = vector.extract_strided_slice %43 {offsets = [5, 0], sizes = [1, 256], strides = [1, 1]} : vector<6x256xf32> to vector<1x256xf32>
    %617 = vector.extract_strided_slice %0 {offsets = [5, 0], sizes = [1, 256], strides = [1, 1]} : vector<6x256xf32> to vector<1x256xf32>
    %618 = vector.extract_strided_slice %48 {offsets = [5, 0], sizes = [1, 256], strides = [1, 1]} : vector<6x256xf32> to vector<1x256xf32>
    %619 = vector.extract_strided_slice %56 {offsets = [5, 0], sizes = [1, 256], strides = [1, 1]} : vector<6x256xf32> to vector<1x256xf32>
    %620 = vector.extract_strided_slice %61 {offsets = [5, 0], sizes = [1, 256], strides = [1, 1]} : vector<6x256xf32> to vector<1x256xf32>
    %621 = vector.extract_strided_slice %69 {offsets = [5, 0], sizes = [1, 256], strides = [1, 1]} : vector<6x256xf32> to vector<1x256xf32>
    %622 = vector.broadcast %88 : f32 to vector<1x256xf32>
    %623 = arith.mulf %622, %613 : vector<1x256xf32>
    %624 = arith.addf %558, %623 : vector<1x256xf32>
    %625 = vector.broadcast %89 : f32 to vector<1x256xf32>
    %626 = arith.mulf %625, %614 : vector<1x256xf32>
    %627 = arith.addf %624, %626 : vector<1x256xf32>
    %628 = vector.broadcast %90 : f32 to vector<1x256xf32>
    %629 = arith.mulf %628, %615 : vector<1x256xf32>
    %630 = arith.addf %627, %629 : vector<1x256xf32>
    %631 = vector.broadcast %91 : f32 to vector<1x256xf32>
    %632 = arith.mulf %631, %616 : vector<1x256xf32>
    %633 = arith.addf %630, %632 : vector<1x256xf32>
    %634 = vector.broadcast %92 : f32 to vector<1x256xf32>
    %635 = arith.mulf %634, %617 : vector<1x256xf32>
    %636 = arith.addf %633, %635 : vector<1x256xf32>
    %637 = vector.broadcast %93 : f32 to vector<1x256xf32>
    %638 = arith.mulf %637, %618 : vector<1x256xf32>
    %639 = arith.addf %636, %638 : vector<1x256xf32>
    %640 = vector.broadcast %94 : f32 to vector<1x256xf32>
    %641 = arith.mulf %640, %619 : vector<1x256xf32>
    %642 = arith.addf %639, %641 : vector<1x256xf32>
    %643 = vector.broadcast %95 : f32 to vector<1x256xf32>
    %644 = arith.mulf %643, %620 : vector<1x256xf32>
    %645 = arith.addf %642, %644 : vector<1x256xf32>
    %646 = vector.broadcast %96 : f32 to vector<1x256xf32>
    %647 = arith.mulf %646, %621 : vector<1x256xf32>
    %648 = arith.addf %645, %647 : vector<1x256xf32>
    %649 = vector.broadcast %115 : f32 to vector<1x256xf32>
    %650 = arith.mulf %649, %613 : vector<1x256xf32>
    %651 = arith.addf %585, %650 : vector<1x256xf32>
    %652 = vector.broadcast %116 : f32 to vector<1x256xf32>
    %653 = arith.mulf %652, %614 : vector<1x256xf32>
    %654 = arith.addf %651, %653 : vector<1x256xf32>
    %655 = vector.broadcast %117 : f32 to vector<1x256xf32>
    %656 = arith.mulf %655, %615 : vector<1x256xf32>
    %657 = arith.addf %654, %656 : vector<1x256xf32>
    %658 = vector.broadcast %118 : f32 to vector<1x256xf32>
    %659 = arith.mulf %658, %616 : vector<1x256xf32>
    %660 = arith.addf %657, %659 : vector<1x256xf32>
    %661 = vector.broadcast %119 : f32 to vector<1x256xf32>
    %662 = arith.mulf %661, %617 : vector<1x256xf32>
    %663 = arith.addf %660, %662 : vector<1x256xf32>
    %664 = vector.broadcast %120 : f32 to vector<1x256xf32>
    %665 = arith.mulf %664, %618 : vector<1x256xf32>
    %666 = arith.addf %663, %665 : vector<1x256xf32>
    %667 = vector.broadcast %121 : f32 to vector<1x256xf32>
    %668 = arith.mulf %667, %619 : vector<1x256xf32>
    %669 = arith.addf %666, %668 : vector<1x256xf32>
    %670 = vector.broadcast %122 : f32 to vector<1x256xf32>
    %671 = arith.mulf %670, %620 : vector<1x256xf32>
    %672 = arith.addf %669, %671 : vector<1x256xf32>
    %673 = vector.broadcast %123 : f32 to vector<1x256xf32>
    %674 = arith.mulf %673, %621 : vector<1x256xf32>
    %675 = arith.addf %672, %674 : vector<1x256xf32>
    %676 = vector.broadcast %142 : f32 to vector<1x256xf32>
    %677 = arith.mulf %676, %613 : vector<1x256xf32>
    %678 = arith.addf %612, %677 : vector<1x256xf32>
    %679 = vector.broadcast %143 : f32 to vector<1x256xf32>
    %680 = arith.mulf %679, %614 : vector<1x256xf32>
    %681 = arith.addf %678, %680 : vector<1x256xf32>
    %682 = vector.broadcast %144 : f32 to vector<1x256xf32>
    %683 = arith.mulf %682, %615 : vector<1x256xf32>
    %684 = arith.addf %681, %683 : vector<1x256xf32>
    %685 = vector.broadcast %145 : f32 to vector<1x256xf32>
    %686 = arith.mulf %685, %616 : vector<1x256xf32>
    %687 = arith.addf %684, %686 : vector<1x256xf32>
    %688 = vector.broadcast %146 : f32 to vector<1x256xf32>
    %689 = arith.mulf %688, %617 : vector<1x256xf32>
    %690 = arith.addf %687, %689 : vector<1x256xf32>
    %691 = vector.broadcast %147 : f32 to vector<1x256xf32>
    %692 = arith.mulf %691, %618 : vector<1x256xf32>
    %693 = arith.addf %690, %692 : vector<1x256xf32>
    %694 = vector.broadcast %148 : f32 to vector<1x256xf32>
    %695 = arith.mulf %694, %619 : vector<1x256xf32>
    %696 = arith.addf %693, %695 : vector<1x256xf32>
    %697 = vector.broadcast %149 : f32 to vector<1x256xf32>
    %698 = arith.mulf %697, %620 : vector<1x256xf32>
    %699 = arith.addf %696, %698 : vector<1x256xf32>
    %700 = vector.broadcast %150 : f32 to vector<1x256xf32>
    %701 = arith.mulf %700, %621 : vector<1x256xf32>
    %702 = arith.addf %699, %701 : vector<1x256xf32>
    %c3_35 = arith.constant 3 : index
    %c0_36 = arith.constant 0 : index
    %703 = vector.load %arg3[%c3_35, %c0_36] : memref<6x256xf32, #tpu.memory_space<vmem>>, vector<1x256xf32>
    tpu.vector_store %arg3[%c3_35, %c0_36], %648 {strides = array<i32>} : memref<6x256xf32, #tpu.memory_space<vmem>>, vector<1x256xf32>,
    %c4_37 = arith.constant 4 : index
    %c0_38 = arith.constant 0 : index
    %704 = vector.load %arg3[%c4_37, %c0_38] : memref<6x256xf32, #tpu.memory_space<vmem>>, vector<1x256xf32>
    tpu.vector_store %arg3[%c4_37, %c0_38], %675 {strides = array<i32>} : memref<6x256xf32, #tpu.memory_space<vmem>>, vector<1x256xf32>,
    %c5_39 = arith.constant 5 : index
    %c0_40 = arith.constant 0 : index
    %705 = vector.load %arg3[%c5_39, %c0_40] : memref<6x256xf32, #tpu.memory_space<vmem>>, vector<1x256xf32>
    tpu.vector_store %arg3[%c5_39, %c0_40], %702 {strides = array<i32>} : memref<6x256xf32, #tpu.memory_space<vmem>>, vector<1x256xf32>,
    return
  }
}

</mosaic_0001>

<llo_original>
// kernel: conv3x3_pallas.1
$region0: #{conv3x3_pallas.1}
  #allocation0 [shape = 'u32[]', space=smem, size = 0x4, offset = 0x4, fixed_abs, tag = 'smem constant byte address 0x4 - core index']
  #allocation1 [shape = 'u32[72,128]{1,0:T(1,128)}', space=vmem, size = 0x9000, scoped, tag = 'internal scratch']
  %s0 = inlined_call_operand.vmem [shape: f32[6,256], index: 0, kind: input, shape index: {}]
  %s1 = inlined_call_operand.vmem [shape: f32[81], index: 1, kind: input, shape index: {}]
  %s2 = inlined_call_operand.vmem [shape: f32[3], index: 2, kind: input, shape index: {}]
  %s3 = inlined_call_operand.vmem [shape: f32[6,256], index: 3, kind: output, shape index: {}]
  %s4 = sld [smem:[#allocation0]]
  $region30: #{conv3x3_pallas.1} parent=0
    _
  %s6 = ssub.s32 1, %s4
  %s7 = scalar_select 0, %s6, %s4
  $region1: #{conv3x3_pallas.1} parent=0
    #allocation2 [shape = 'u8[512]{0}', space=smem, size = 0x200, scoped, tag = 'input window, operand 1, single buffered']
    #allocation3 [shape = 's32[1]{0}', space=sflag, size = 0x4, scoped, tag = 'scoped memory for conv3x3_pallas.1']
    #allocation4 [shape = 'u8[512]{0}', space=smem, size = 0x200, scoped, tag = 'input window, operand 2, single buffered']
    #allocation5 [shape = 's32[1]{0}', space=sflag, size = 0x4, scoped, tag = 'scoped memory for conv3x3_pallas.1']
    %8 = vsyncpa [#allocation3], 0
    %9 = vsyncpa [#allocation5], 0
    // Predicated region
    $region2: #{conv3x3_pallas.1} parent=1 // pred_check
      _
    $region3: #{conv3x3_pallas.1} parent=1 // pred_check_branch
      %11 = sbr.rel (0) target = $region5
    $region4: #{conv3x3_pallas.1} parent=1 // pred_region
      _
    $region5: #{conv3x3_pallas.1} parent=1 // pred_fallthru
      _
    // Predicated region
    $region6: #{conv3x3_pallas.1} parent=1 // pred_check
      _
    $region7: #{conv3x3_pallas.1} parent=1 // pred_check_branch
      %13 = sbr.rel (0) target = $region9
    $region8: #{conv3x3_pallas.1} parent=1 // pred_region
      %15 = vsyncadd [#allocation3], 0
      %s17 = sshll.u32 %s1, 4
      %s18 = int_to_ptr.vmem [resolvable:$true] %s17
      %20 = dma.vmem_to_smem %s18, 16, [#allocation2], [#allocation3]
    $region9: #{conv3x3_pallas.1} parent=1 // pred_fallthru
      _
    // Predicated region
    $region10: #{conv3x3_pallas.1} parent=1 // pred_check
      _
    $region11: #{conv3x3_pallas.1} parent=1 // pred_check_branch
      %22 = sbr.rel (0) target = $region13
    $region12: #{conv3x3_pallas.1} parent=1 // pred_region
      %24 = vsyncadd [#allocation5], 0
      %s26 = sshll.u32 %s2, 4
      %s27 = int_to_ptr.vmem [resolvable:$true] %s26
      %29 = dma.vmem_to_smem %s27, 16, [#allocation4], [#allocation5]
    $region13: #{conv3x3_pallas.1} parent=1 // pred_fallthru
      _
    // Predicated region
    $region14: #{conv3x3_pallas.1} parent=1 // pred_check
      _
    $region15: #{conv3x3_pallas.1} parent=1 // pred_check_branch
      %31 = sbr.rel (0) target = $region17
    $region16: #{conv3x3_pallas.1} parent=1 // pred_region
      %33 = dma.done [#allocation3], 16
    $region17: #{conv3x3_pallas.1} parent=1 // pred_fallthru
      _
    // Predicated region
    $region18: #{conv3x3_pallas.1} parent=1 // pred_check
      _
    $region19: #{conv3x3_pallas.1} parent=1 // pred_check_branch
      %35 = sbr.rel (0) target = $region21
    $region20: #{conv3x3_pallas.1} parent=1 // pred_region
      %37 = dma.done [#allocation5], 16
    $region21: #{conv3x3_pallas.1} parent=1 // pred_fallthru
      _
    %38 = sfence
    %v39 = vld [vmem:[%s0] sm:$0x3f]
    %v40 = vld [vmem:[%s0 + $0x8] sm:$0x3f]
    %v41 = vlaneseq
    %v42 = vand.u32 %v41, 127
    %v43 = vadd.s32 %v42, 128
    %vm44 = vcmp.lt.s32.totalorder %v42, 0
    %v45 = vsub.s32 0, %v42
    %v46 = vsel %vm44, %v45, %v42
    %v47 = vshrl.u32 %v46, 4
    %v48 = vand.u32 %v46, 15
    %v49 = vsub.s32 0, %v48
    %v50 = vsel %vm44, %v49, %v48
    %vm51 = vcmp.lt.s32.totalorder %v43, 0
    %v52 = vsub.s32 0, %v43
    %v53 = vsel %vm51, %v52, %v43
    %v54 = vshrl.u32 %v53, 4
    %v55 = vand.u32 %v53, 15
    %v56 = vsub.s32 0, %v55
    %v57 = vsel %vm51, %v56, %v55
    %vm58 = vcmp.ne.s32.totalorder %v50, 0
    %vm59 = vcmp.ne.s32.totalorder %v57, 0
    %vm60 = vcmp.lt.s32.totalorder %v50, 0
    %vm61 = vcmp.lt.s32.totalorder %v57, 0
    %vm62 = vmand %vm60, %vm58
    %vm63 = vmand %vm61, %vm59
    %v64 = vadd.s32 %v50, 16
    %v65 = vadd.s32 %v57, 16
    %v66 = vsel %vm62, %v64, %v50
    %v67 = vsel %vm63, %v65, %v57
    %68 = vrot.lane.b32.xlu0 %v39, 17
    %v69 = vpop.permute.xlu0 %68
    %70 = vrot.lane.b32.xlu0 %v40, 17
    %v71 = vpop.permute.xlu0 %70
    %vm72 = vcmp.lt.s32.totalorder %v42, 17
    %v73 = vsel %vm72, %v69, %v71
    %v74 = vsel %vm72, %v71, %v69
    %vm75 = vcmp.ge.s32.totalorder %v42, 16
    %vm76 = vcmp.ge.s32.totalorder %v43, 16
    %vm77 = vcmp.ge.s32.totalorder %v66, 1
    %vm78 = vcmp.ge.s32.totalorder %v67, 1
    %vm79 = vmand %vm75, %vm77
    %vm80 = vmand %vm76, %vm78
    %v81 = vsel %vm79, %v74, 0.0
    %v82 = vsel %vm80, %v73, 0.0
    %83 = vrot.lane.b32.xlu0 %v39, 16
    %v84 = vpop.permute.xlu0 %83
    %85 = vrot.lane.b32.xlu0 %v40, 16
    %v86 = vpop.permute.xlu0 %85
    %vm87 = vcmp.lt.s32.totalorder %v42, 16
    %v88 = vsel %vm87, %v84, %v86
    %v89 = vsel %vm87, %v86, %v84
    %v90 = vsel %vm75, %v89, 0.0
    %v91 = vsel %vm76, %v88, 0.0
    %92 = vrot.lane.b32.xlu0 %v39, 15
    %v93 = vpop.permute.xlu0 %92
    %94 = vrot.lane.b32.xlu0 %v40, 15
    %v95 = vpop.permute.xlu0 %94
    %vm96 = vcmp.lt.s32.totalorder %v42, 15
    %v97 = vsel %vm96, %v93, %v95
    %v98 = vsel %vm96, %v95, %v93
    %vm99 = vcmp.lt.s32.totalorder %v66, 15
    %vm100 = vcmp.lt.s32.totalorder %v67, 15
    %vm101 = vmand %vm75, %vm99
    %vm102 = vmand %vm76, %vm100
    %v103 = vsel %vm101, %v98, 0.0
    %v104 = vsel %vm102, %v97, 0.0
    %105 = vrot.lane.b32.xlu0 %v39, 1
    %v106 = vpop.permute.xlu0 %105
    %107 = vrot.lane.b32.xlu0 %v40, 1
    %v108 = vpop.permute.xlu0 %107
    %vm109 = vcmp.lt.s32.totalorder %v42, 1
    %v110 = vsel %vm109, %v106, %v108
    %v111 = vsel %vm109, %v108, %v106
    %v112 = vsel %vm77, %v111, 0.0
    %v113 = vsel %vm78, %v110, 0.0
    %114 = vrot.lane.b32.xlu0 %v39, 127
    %v115 = vpop.permute.xlu0 %114
    %116 = vrot.lane.b32.xlu0 %v40, 127
    %v117 = vpop.permute.xlu0 %116
    %vm118 = vcmp.lt.s32.totalorder %v42, 127
    %v119 = vsel %vm118, %v115, %v117
    %v120 = vsel %vm118, %v117, %v115
    %v121 = vsel %vm99, %v119, 0.0
    %v122 = vsel %vm100, %v120, 0.0
    %123 = vrot.lane.b32.xlu0 %v39, 113
    %v124 = vpop.permute.xlu0 %123
    %125 = vrot.lane.b32.xlu0 %v40, 113
    %v126 = vpop.permute.xlu0 %125
    %vm127 = vcmp.lt.s32.totalorder %v42, 113
    %v128 = vsel %vm127, %v124, %v126
    %v129 = vsel %vm127, %v126, %v124
    %vm130 = vcmp.lt.s32.totalorder %v42, 240
    %vm131 = vcmp.lt.s32.totalorder %v43, 240
    %vm132 = vmand %vm130, %vm77
    %vm133 = vmand %vm131, %vm78
    %v134 = vsel %vm132, %v128, 0.0
    %v135 = vsel %vm133, %v129, 0.0
    %136 = vrot.lane.b32.xlu0 %v39, 112
    %v137 = vpop.permute.xlu0 %136
    %138 = vrot.lane.b32.xlu0 %v40, 112
    %v139 = vpop.permute.xlu0 %138
    %vm140 = vcmp.lt.s32.totalorder %v42, 112
    %v141 = vsel %vm140, %v137, %v139
    %v142 = vsel %vm140, %v139, %v137
    %v143 = vsel %vm130, %v141, 0.0
    %v144 = vsel %vm131, %v142, 0.0
    %145 = vrot.lane.b32.xlu0 %v39, 111
    %v146 = vpop.permute.xlu0 %145
    %147 = vrot.lane.b32.xlu0 %v40, 111
    %v148 = vpop.permute.xlu0 %147
    %vm149 = vcmp.lt.s32.totalorder %v42, 111
    %v150 = vsel %vm149, %v146, %v148
    %v151 = vsel %vm149, %v148, %v146
    %vm152 = vmand %vm130, %vm99
    %vm153 = vmand %vm131, %vm100
    %v154 = vsel %vm152, %v150, 0.0
    %v155 = vsel %vm153, %v151, 0.0
    %s156 = sld [smem:[#allocation2]]
    %s157 = sld [smem:[#allocation2 + $0x1]]
    %s158 = sld [smem:[#allocation2 + $0x2]]
    %s159 = sld [smem:[#allocation2 + $0x3]]
    %s160 = sld [smem:[#allocation2 + $0x4]]
    %s161 = sld [smem:[#allocation2 + $0x5]]
    %s162 = sld [smem:[#allocation2 + $0x6]]
    %s163 = sld [smem:[#allocation2 + $0x7]]
    %s164 = sld [smem:[#allocation2 + $0x8]]
    %s165 = sld [smem:[#allocation2 + $0x9]]
    %s166 = sld [smem:[#allocation2 + $0xa]]
    %s167 = sld [smem:[#allocation2 + $0xb]]
    %s168 = sld [smem:[#allocation2 + $0xc]]
    %s169 = sld [smem:[#allocation2 + $0xd]]
    %s170 = sld [smem:[#allocation2 + $0xe]]
    %s171 = sld [smem:[#allocation2 + $0xf]]
    %s172 = sld [smem:[#allocation2 + $0x10]]
    %s173 = sld [smem:[#allocation2 + $0x11]]
    %s174 = sld [smem:[#allocation2 + $0x12]]
    %s175 = sld [smem:[#allocation2 + $0x13]]
    %s176 = sld [smem:[#allocation2 + $0x14]]
    %s177 = sld [smem:[#allocation2 + $0x15]]
    %s178 = sld [smem:[#allocation2 + $0x16]]
    %s179 = sld [smem:[#allocation2 + $0x17]]
    %s180 = sld [smem:[#allocation2 + $0x18]]
    %s181 = sld [smem:[#allocation2 + $0x19]]
    %s182 = sld [smem:[#allocation2 + $0x1a]]
    %s183 = sld [smem:[#allocation2 + $0x1b]]
    %s184 = sld [smem:[#allocation2 + $0x1c]]
    %s185 = sld [smem:[#allocation2 + $0x1d]]
    %s186 = sld [smem:[#allocation2 + $0x1e]]
    %s187 = sld [smem:[#allocation2 + $0x1f]]
    %s188 = sld [smem:[#allocation2 + $0x20]]
    %s189 = sld [smem:[#allocation2 + $0x21]]
    %s190 = sld [smem:[#allocation2 + $0x22]]
    %s191 = sld [smem:[#allocation2 + $0x23]]
    %s192 = sld [smem:[#allocation2 + $0x24]]
    %s193 = sld [smem:[#allocation2 + $0x25]]
    %s194 = sld [smem:[#allocation2 + $0x26]]
    %s195 = sld [smem:[#allocation2 + $0x27]]
    %s196 = sld [smem:[#allocation2 + $0x28]]
    %s197 = sld [smem:[#allocation2 + $0x29]]
    %s198 = sld [smem:[#allocation2 + $0x2a]]
    %s199 = sld [smem:[#allocation2 + $0x2b]]
    %s200 = sld [smem:[#allocation2 + $0x2c]]
    %s201 = sld [smem:[#allocation2 + $0x2d]]
    %s202 = sld [smem:[#allocation2 + $0x2e]]
    %s203 = sld [smem:[#allocation2 + $0x2f]]
    %s204 = sld [smem:[#allocation2 + $0x30]]
    %s205 = sld [smem:[#allocation2 + $0x31]]
    %s206 = sld [smem:[#allocation2 + $0x32]]
    %s207 = sld [smem:[#allocation2 + $0x33]]
    %s208 = sld [smem:[#allocation2 + $0x34]]
    %s209 = sld [smem:[#allocation2 + $0x35]]
    %s210 = sld [smem:[#allocation2 + $0x36]]
    %s211 = sld [smem:[#allocation2 + $0x37]]
    %s212 = sld [smem:[#allocation2 + $0x38]]
    %s213 = sld [smem:[#allocation2 + $0x39]]
    %s214 = sld [smem:[#allocation2 + $0x3a]]
    %s215 = sld [smem:[#allocation2 + $0x3b]]
    %s216 = sld [smem:[#allocation2 + $0x3c]]
    %s217 = sld [smem:[#allocation2 + $0x3d]]
    %s218 = sld [smem:[#allocation2 + $0x3e]]
    %s219 = sld [smem:[#allocation2 + $0x3f]]
    %s220 = sld [smem:[#allocation2 + $0x40]]
    %s221 = sld [smem:[#allocation2 + $0x41]]
    %s222 = sld [smem:[#allocation2 + $0x42]]
    %s223 = sld [smem:[#allocation2 + $0x43]]
    %s224 = sld [smem:[#allocation2 + $0x44]]
    %s225 = sld [smem:[#allocation2 + $0x45]]
    %s226 = sld [smem:[#allocation2 + $0x46]]
    %s227 = sld [smem:[#allocation2 + $0x47]]
    %s228 = sld [smem:[#allocation2 + $0x48]]
    %s229 = sld [smem:[#allocation2 + $0x49]]
    %s230 = sld [smem:[#allocation2 + $0x4a]]
    %s231 = sld [smem:[#allocation2 + $0x4b]]
    %s232 = sld [smem:[#allocation2 + $0x4c]]
    %s233 = sld [smem:[#allocation2 + $0x4d]]
    %s234 = sld [smem:[#allocation2 + $0x4e]]
    %s235 = sld [smem:[#allocation2 + $0x4f]]
    %s236 = sld [smem:[#allocation2 + $0x50]]
    %s237 = sld [smem:[#allocation4]]
    %s238 = sld [smem:[#allocation4 + $0x1]]
    %s239 = sld [smem:[#allocation4 + $0x2]]
    %v240 = vstv %s237
    %v241 = vstv %s238
    %v242 = vstv %s239
    %v243 = vstv %s156
    %v244 = vmul.f32 %v243, %v81
    %v245 = vmul.f32 %v243, %v82
    %v246 = vadd.f32 %v240, %v244
    %v247 = vadd.f32 %v240, %v245
    %v248 = vstv %s157
    %v249 = vmul.f32 %v248, %v90
    %v250 = vmul.f32 %v248, %v91
    %v251 = vadd.f32 %v246, %v249
    %v252 = vadd.f32 %v247, %v250
    %v253 = vstv %s158
    %v254 = vmul.f32 %v253, %v103
    %v255 = vmul.f32 %v253, %v104
    %v256 = vadd.f32 %v251, %v254
    %v257 = vadd.f32 %v252, %v255
    %v258 = vstv %s159
    %v259 = vmul.f32 %v258, %v112
    %v260 = vmul.f32 %v258, %v113
    %v261 = vadd.f32 %v256, %v259
    %v262 = vadd.f32 %v257, %v260
    %v263 = vstv %s160
    %v264 = vmul.f32 %v263, %v39
    %v265 = vmul.f32 %v263, %v40
    %v266 = vadd.f32 %v261, %v264
    %v267 = vadd.f32 %v262, %v265
    %v268 = vstv %s161
    %v269 = vmul.f32 %v268, %v121
    %v270 = vmul.f32 %v268, %v122
    %v271 = vadd.f32 %v266, %v269
    %v272 = vadd.f32 %v267, %v270
    %v273 = vstv %s162
    %v274 = vmul.f32 %v273, %v134
    %v275 = vmul.f32 %v273, %v135
    %v276 = vadd.f32 %v271, %v274
    %v277 = vadd.f32 %v272, %v275
    %v278 = vstv %s163
    %v279 = vmul.f32 %v278, %v143
    %v280 = vmul.f32 %v278, %v144
    %v281 = vadd.f32 %v276, %v279
    %v282 = vadd.f32 %v277, %v280
    %v283 = vstv %s164
    %v284 = vmul.f32 %v283, %v154
    %v285 = vmul.f32 %v283, %v155
    %v286 = vadd.f32 %v281, %v284
    %v287 = vadd.f32 %v282, %v285
    %v288 = vstv %s183
    %v289 = vmul.f32 %v288, %v81
    %v290 = vmul.f32 %v288, %v82
    %v291 = vadd.f32 %v241, %v289
    %v292 = vadd.f32 %v241, %v290
    %v293 = vstv %s184
    %v294 = vmul.f32 %v293, %v90
    %v295 = vmul.f32 %v293, %v91
    %v296 = vadd.f32 %v291, %v294
    %v297 = vadd.f32 %v292, %v295
    %v298 = vstv %s185
    %v299 = vmul.f32 %v298, %v103
    %v300 = vmul.f32 %v298, %v104
    %v301 = vadd.f32 %v296, %v299
    %v302 = vadd.f32 %v297, %v300
    %v303 = vstv %s186
    %v304 = vmul.f32 %v303, %v112
    %v305 = vmul.f32 %v303, %v113
    %v306 = vadd.f32 %v301, %v304
    %v307 = vadd.f32 %v302, %v305
    %v308 = vstv %s187
    %v309 = vmul.f32 %v308, %v39
    %v310 = vmul.f32 %v308, %v40
    %v311 = vadd.f32 %v306, %v309
    %v312 = vadd.f32 %v307, %v310
    %v313 = vstv %s188
    %v314 = vmul.f32 %v313, %v121
    %v315 = vmul.f32 %v313, %v122
    %v316 = vadd.f32 %v311, %v314
    %v317 = vadd.f32 %v312, %v315
    %v318 = vstv %s189
    %v319 = vmul.f32 %v318, %v134
    %v320 = vmul.f32 %v318, %v135
    %v321 = vadd.f32 %v316, %v319
    %v322 = vadd.f32 %v317, %v320
    %v323 = vstv %s190
    %v324 = vmul.f32 %v323, %v143
    %v325 = vmul.f32 %v323, %v144
    %v326 = vadd.f32 %v321, %v324
    %v327 = vadd.f32 %v322, %v325
    %v328 = vstv %s191
    %v329 = vmul.f32 %v328, %v154
    %v330 = vmul.f32 %v328, %v155
    %v331 = vadd.f32 %v326, %v329
    %v332 = vadd.f32 %v327, %v330
    %v333 = vstv %s210
    %v334 = vmul.f32 %v333, %v81
    %v335 = vmul.f32 %v333, %v82
    %v336 = vadd.f32 %v242, %v334
    %v337 = vadd.f32 %v242, %v335
    %v338 = vstv %s211
    %v339 = vmul.f32 %v338, %v90
    %v340 = vmul.f32 %v338, %v91
    %v341 = vadd.f32 %v336, %v339
    %v342 = vadd.f32 %v337, %v340
    %v343 = vstv %s212
    %v344 = vmul.f32 %v343, %v103
    %v345 = vmul.f32 %v343, %v104
    %v346 = vadd.f32 %v341, %v344
    %v347 = vadd.f32 %v342, %v345
    %v348 = vstv %s213
    %v349 = vmul.f32 %v348, %v112
    %v350 = vmul.f32 %v348, %v113
    %v351 = vadd.f32 %v346, %v349
    %v352 = vadd.f32 %v347, %v350
    %v353 = vstv %s214
    %v354 = vmul.f32 %v353, %v39
    %v355 = vmul.f32 %v353, %v40
    %v356 = vadd.f32 %v351, %v354
    %v357 = vadd.f32 %v352, %v355
    %v358 = vstv %s215
    %v359 = vmul.f32 %v358, %v121
    %v360 = vmul.f32 %v358, %v122
    %v361 = vadd.f32 %v356, %v359
    %v362 = vadd.f32 %v357, %v360
    %v363 = vstv %s216
    %v364 = vmul.f32 %v363, %v134
    %v365 = vmul.f32 %v363, %v135
    %v366 = vadd.f32 %v361, %v364
    %v367 = vadd.f32 %v362, %v365
    %v368 = vstv %s217
    %v369 = vmul.f32 %v368, %v143
    %v370 = vmul.f32 %v368, %v144
    %v371 = vadd.f32 %v366, %v369
    %v372 = vadd.f32 %v367, %v370
    %v373 = vstv %s218
    %v374 = vmul.f32 %v373, %v154
    %v375 = vmul.f32 %v373, %v155
    %v376 = vadd.f32 %v371, %v374
    %v377 = vadd.f32 %v372, %v375
    %v378 = vstv %s165
    %v379 = vmul.f32 %v378, %v81
    %v380 = vmul.f32 %v378, %v82
    %v383 = vrot.slane %v379, 1
    %v384 = vrot.slane %v380, 1
    %v387 = vadd.f32 %v286, %v383
    %v388 = vadd.f32 %v287, %v384
    %v389 = vstv %s166
    %v390 = vmul.f32 %v389, %v90
    %v391 = vmul.f32 %v389, %v91
    %v394 = vrot.slane %v390, 1
    %v395 = vrot.slane %v391, 1
    %v398 = vadd.f32 %v387, %v394
    %v399 = vadd.f32 %v388, %v395
    %v400 = vstv %s167
    %v401 = vmul.f32 %v400, %v103
    %v402 = vmul.f32 %v400, %v104
    %v405 = vrot.slane %v401, 1
    %v406 = vrot.slane %v402, 1
    %v409 = vadd.f32 %v398, %v405
    %v410 = vadd.f32 %v399, %v406
    %v411 = vstv %s168
    %v412 = vmul.f32 %v411, %v112
    %v413 = vmul.f32 %v411, %v113
    %v416 = vrot.slane %v412, 1
    %v417 = vrot.slane %v413, 1
    %v420 = vadd.f32 %v409, %v416
    %v421 = vadd.f32 %v410, %v417
    %v422 = vstv %s169
    %v423 = vmul.f32 %v422, %v39
    %v424 = vmul.f32 %v422, %v40
    %v427 = vrot.slane %v423, 1
    %v428 = vrot.slane %v424, 1
    %v431 = vadd.f32 %v420, %v427
    %v432 = vadd.f32 %v421, %v428
    %v433 = vstv %s170
    %v434 = vmul.f32 %v433, %v121
    %v435 = vmul.f32 %v433, %v122
    %v438 = vrot.slane %v434, 1
    %v439 = vrot.slane %v435, 1
    %v442 = vadd.f32 %v431, %v438
    %v443 = vadd.f32 %v432, %v439
    %v444 = vstv %s171
    %v445 = vmul.f32 %v444, %v134
    %v446 = vmul.f32 %v444, %v135
    %v449 = vrot.slane %v445, 1
    %v450 = vrot.slane %v446, 1
    %v453 = vadd.f32 %v442, %v449
    %v454 = vadd.f32 %v443, %v450
    %v455 = vstv %s172
    %v456 = vmul.f32 %v455, %v143
    %v457 = vmul.f32 %v455, %v144
    %v460 = vrot.slane %v456, 1
    %v461 = vrot.slane %v457, 1
    %v464 = vadd.f32 %v453, %v460
    %v465 = vadd.f32 %v454, %v461
    %v466 = vstv %s173
    %v467 = vmul.f32 %v466, %v154
    %v468 = vmul.f32 %v466, %v155
    %v471 = vrot.slane %v467, 1
    %v472 = vrot.slane %v468, 1
    %v475 = vadd.f32 %v464, %v471
    %v476 = vadd.f32 %v465, %v472
    %v477 = vstv %s192
    %v478 = vmul.f32 %v477, %v81
    %v479 = vmul.f32 %v477, %v82
    %v482 = vrot.slane %v478, 1
    %v483 = vrot.slane %v479, 1
    %v486 = vadd.f32 %v331, %v482
    %v487 = vadd.f32 %v332, %v483
    %v488 = vstv %s193
    %v489 = vmul.f32 %v488, %v90
    %v490 = vmul.f32 %v488, %v91
    %v493 = vrot.slane %v489, 1
    %v494 = vrot.slane %v490, 1
    %v497 = vadd.f32 %v486, %v493
    %v498 = vadd.f32 %v487, %v494
    %v499 = vstv %s194
    %v500 = vmul.f32 %v499, %v103
    %v501 = vmul.f32 %v499, %v104
    %v504 = vrot.slane %v500, 1
    %v505 = vrot.slane %v501, 1
    %v508 = vadd.f32 %v497, %v504
    %v509 = vadd.f32 %v498, %v505
    %v510 = vstv %s195
    %v511 = vmul.f32 %v510, %v112
    %v512 = vmul.f32 %v510, %v113
    %v515 = vrot.slane %v511, 1
    %v516 = vrot.slane %v512, 1
    %v519 = vadd.f32 %v508, %v515
    %v520 = vadd.f32 %v509, %v516
    %v521 = vstv %s196
    %v522 = vmul.f32 %v521, %v39
    %v523 = vmul.f32 %v521, %v40
    %v526 = vrot.slane %v522, 1
    %v527 = vrot.slane %v523, 1
    %v530 = vadd.f32 %v519, %v526
    %v531 = vadd.f32 %v520, %v527
    %v532 = vstv %s197
    %v533 = vmul.f32 %v532, %v121
    %v534 = vmul.f32 %v532, %v122
    %v537 = vrot.slane %v533, 1
    %v538 = vrot.slane %v534, 1
    %v541 = vadd.f32 %v530, %v537
    %v542 = vadd.f32 %v531, %v538
    %v543 = vstv %s198
    %v544 = vmul.f32 %v543, %v134
    %v545 = vmul.f32 %v543, %v135
    %v548 = vrot.slane %v544, 1
    %v549 = vrot.slane %v545, 1
    %v552 = vadd.f32 %v541, %v548
    %v553 = vadd.f32 %v542, %v549
    %v554 = vstv %s199
    %v555 = vmul.f32 %v554, %v143
    %v556 = vmul.f32 %v554, %v144
    %v559 = vrot.slane %v555, 1
    %v560 = vrot.slane %v556, 1
    %v563 = vadd.f32 %v552, %v559
    %v564 = vadd.f32 %v553, %v560
    %v565 = vstv %s200
    %v566 = vmul.f32 %v565, %v154
    %v567 = vmul.f32 %v565, %v155
    %v570 = vrot.slane %v566, 1
    %v571 = vrot.slane %v567, 1
    %v574 = vadd.f32 %v563, %v570
    %v575 = vadd.f32 %v564, %v571
    %v576 = vstv %s219
    %v577 = vmul.f32 %v576, %v81
    %v578 = vmul.f32 %v576, %v82
    %v581 = vrot.slane %v577, 1
    %v582 = vrot.slane %v578, 1
    %v585 = vadd.f32 %v376, %v581
    %v586 = vadd.f32 %v377, %v582
    %v587 = vstv %s220
    %v588 = vmul.f32 %v587, %v90
    %v589 = vmul.f32 %v587, %v91
    %v592 = vrot.slane %v588, 1
    %v593 = vrot.slane %v589, 1
    %v596 = vadd.f32 %v585, %v592
    %v597 = vadd.f32 %v586, %v593
    %v598 = vstv %s221
    %v599 = vmul.f32 %v598, %v103
    %v600 = vmul.f32 %v598, %v104
    %v603 = vrot.slane %v599, 1
    %v604 = vrot.slane %v600, 1
    %v607 = vadd.f32 %v596, %v603
    %v608 = vadd.f32 %v597, %v604
    %v609 = vstv %s222
    %v610 = vmul.f32 %v609, %v112
    %v611 = vmul.f32 %v609, %v113
    %v614 = vrot.slane %v610, 1
    %v615 = vrot.slane %v611, 1
    %v618 = vadd.f32 %v607, %v614
    %v619 = vadd.f32 %v608, %v615
    %v620 = vstv %s223
    %v621 = vmul.f32 %v620, %v39
    %v622 = vmul.f32 %v620, %v40
    %v625 = vrot.slane %v621, 1
    %v626 = vrot.slane %v622, 1
    %v629 = vadd.f32 %v618, %v625
    %v630 = vadd.f32 %v619, %v626
    %v631 = vstv %s224
    %v632 = vmul.f32 %v631, %v121
    %v633 = vmul.f32 %v631, %v122
    %v636 = vrot.slane %v632, 1
    %v637 = vrot.slane %v633, 1
    %v640 = vadd.f32 %v629, %v636
    %v641 = vadd.f32 %v630, %v637
    %v642 = vstv %s225
    %v643 = vmul.f32 %v642, %v134
    %v644 = vmul.f32 %v642, %v135
    %v647 = vrot.slane %v643, 1
    %v648 = vrot.slane %v644, 1
    %v651 = vadd.f32 %v640, %v647
    %v652 = vadd.f32 %v641, %v648
    %v653 = vstv %s226
    %v654 = vmul.f32 %v653, %v143
    %v655 = vmul.f32 %v653, %v144
    %v658 = vrot.slane %v654, 1
    %v659 = vrot.slane %v655, 1
    %v662 = vadd.f32 %v651, %v658
    %v663 = vadd.f32 %v652, %v659
    %v664 = vstv %s227
    %v665 = vmul.f32 %v664, %v154
    %v666 = vmul.f32 %v664, %v155
    %v669 = vrot.slane %v665, 1
    %v670 = vrot.slane %v666, 1
    %v673 = vadd.f32 %v662, %v669
    %v674 = vadd.f32 %v663, %v670
    %v675 = vstv %s174
    %v676 = vmul.f32 %v675, %v81
    %v677 = vmul.f32 %v675, %v82
    %v680 = vrot.slane %v676, 2
    %v681 = vrot.slane %v677, 2
    %v684 = vadd.f32 %v475, %v680
    %v685 = vadd.f32 %v476, %v681
    %v686 = vstv %s175
    %v687 = vmul.f32 %v686, %v90
    %v688 = vmul.f32 %v686, %v91
    %v691 = vrot.slane %v687, 2
    %v692 = vrot.slane %v688, 2
    %v695 = vadd.f32 %v684, %v691
    %v696 = vadd.f32 %v685, %v692
    %v697 = vstv %s176
    %v698 = vmul.f32 %v697, %v103
    %v699 = vmul.f32 %v697, %v104
    %v702 = vrot.slane %v698, 2
    %v703 = vrot.slane %v699, 2
    %v706 = vadd.f32 %v695, %v702
    %v707 = vadd.f32 %v696, %v703
    %v708 = vstv %s177
    %v709 = vmul.f32 %v708, %v112
    %v710 = vmul.f32 %v708, %v113
    %v713 = vrot.slane %v709, 2
    %v714 = vrot.slane %v710, 2
    %v717 = vadd.f32 %v706, %v713
    %v718 = vadd.f32 %v707, %v714
    %v719 = vstv %s178
    %v720 = vmul.f32 %v719, %v39
    %v721 = vmul.f32 %v719, %v40
    %v724 = vrot.slane %v720, 2
    %v725 = vrot.slane %v721, 2
    %v728 = vadd.f32 %v717, %v724
    %v729 = vadd.f32 %v718, %v725
    %v730 = vstv %s179
    %v731 = vmul.f32 %v730, %v121
    %v732 = vmul.f32 %v730, %v122
    %v735 = vrot.slane %v731, 2
    %v736 = vrot.slane %v732, 2
    %v739 = vadd.f32 %v728, %v735
    %v740 = vadd.f32 %v729, %v736
    %v741 = vstv %s180
    %v742 = vmul.f32 %v741, %v134
    %v743 = vmul.f32 %v741, %v135
    %v746 = vrot.slane %v742, 2
    %v747 = vrot.slane %v743, 2
    %v750 = vadd.f32 %v739, %v746
    %v751 = vadd.f32 %v740, %v747
    %v752 = vstv %s181
    %v753 = vmul.f32 %v752, %v143
    %v754 = vmul.f32 %v752, %v144
    %v757 = vrot.slane %v753, 2
    %v758 = vrot.slane %v754, 2
    %v761 = vadd.f32 %v750, %v757
    %v762 = vadd.f32 %v751, %v758
    %v763 = vstv %s182
    %v764 = vmul.f32 %v763, %v154
    %v765 = vmul.f32 %v763, %v155
    %v768 = vrot.slane %v764, 2
    %v769 = vrot.slane %v765, 2
    %v772 = vadd.f32 %v761, %v768
    %v773 = vadd.f32 %v762, %v769
    %v774 = vstv %s201
    %v775 = vmul.f32 %v774, %v81
    %v776 = vmul.f32 %v774, %v82
    %v779 = vrot.slane %v775, 2
    %v780 = vrot.slane %v776, 2
    %v783 = vadd.f32 %v574, %v779
    %v784 = vadd.f32 %v575, %v780
    %v785 = vstv %s202
    %v786 = vmul.f32 %v785, %v90
    %v787 = vmul.f32 %v785, %v91
    %v790 = vrot.slane %v786, 2
    %v791 = vrot.slane %v787, 2
    %v794 = vadd.f32 %v783, %v790
    %v795 = vadd.f32 %v784, %v791
    %v796 = vstv %s203
    %v797 = vmul.f32 %v796, %v103
    %v798 = vmul.f32 %v796, %v104
    %v801 = vrot.slane %v797, 2
    %v802 = vrot.slane %v798, 2
    %v805 = vadd.f32 %v794, %v801
    %v806 = vadd.f32 %v795, %v802
    %v807 = vstv %s204
    %v808 = vmul.f32 %v807, %v112
    %v809 = vmul.f32 %v807, %v113
    %v812 = vrot.slane %v808, 2
    %v813 = vrot.slane %v809, 2
    %v816 = vadd.f32 %v805, %v812
    %v817 = vadd.f32 %v806, %v813
    %v818 = vstv %s205
    %v819 = vmul.f32 %v818, %v39
    %v820 = vmul.f32 %v818, %v40
    %v823 = vrot.slane %v819, 2
    %v824 = vrot.slane %v820, 2
    %v827 = vadd.f32 %v816, %v823
    %v828 = vadd.f32 %v817, %v824
    %v829 = vstv %s206
    %v830 = vmul.f32 %v829, %v121
    %v831 = vmul.f32 %v829, %v122
    %v834 = vrot.slane %v830, 2
    %v835 = vrot.slane %v831, 2
    %v838 = vadd.f32 %v827, %v834
    %v839 = vadd.f32 %v828, %v835
    %v840 = vstv %s207
    %v841 = vmul.f32 %v840, %v134
    %v842 = vmul.f32 %v840, %v135
    %v845 = vrot.slane %v841, 2
    %v846 = vrot.slane %v842, 2
    %v849 = vadd.f32 %v838, %v845
    %v850 = vadd.f32 %v839, %v846
    %v851 = vstv %s208
    %v852 = vmul.f32 %v851, %v143
    %v853 = vmul.f32 %v851, %v144
    %v856 = vrot.slane %v852, 2
    %v857 = vrot.slane %v853, 2
    %v860 = vadd.f32 %v849, %v856
    %v861 = vadd.f32 %v850, %v857
    %v862 = vstv %s209
    %v863 = vmul.f32 %v862, %v154
    %v864 = vmul.f32 %v862, %v155
    %v867 = vrot.slane %v863, 2
    %v868 = vrot.slane %v864, 2
    %v871 = vadd.f32 %v860, %v867
    %v872 = vadd.f32 %v861, %v868
    %v873 = vstv %s228
    %v874 = vmul.f32 %v873, %v81
    %v875 = vmul.f32 %v873, %v82
    %v878 = vrot.slane %v874, 2
    %v879 = vrot.slane %v875, 2
    %v882 = vadd.f32 %v673, %v878
    %v883 = vadd.f32 %v674, %v879
    %v884 = vstv %s229
    %v885 = vmul.f32 %v884, %v90
    %v886 = vmul.f32 %v884, %v91
    %v889 = vrot.slane %v885, 2
    %v890 = vrot.slane %v886, 2
    %v893 = vadd.f32 %v882, %v889
    %v894 = vadd.f32 %v883, %v890
    %v895 = vstv %s230
    %v896 = vmul.f32 %v895, %v103
    %v897 = vmul.f32 %v895, %v104
    %v900 = vrot.slane %v896, 2
    %v901 = vrot.slane %v897, 2
    %v904 = vadd.f32 %v893, %v900
    %v905 = vadd.f32 %v894, %v901
    %v906 = vstv %s231
    %v907 = vmul.f32 %v906, %v112
    %v908 = vmul.f32 %v906, %v113
    %v911 = vrot.slane %v907, 2
    %v912 = vrot.slane %v908, 2
    %v915 = vadd.f32 %v904, %v911
    %v916 = vadd.f32 %v905, %v912
    %v917 = vstv %s232
    %v918 = vmul.f32 %v917, %v39
    %v919 = vmul.f32 %v917, %v40
    %v922 = vrot.slane %v918, 2
    %v923 = vrot.slane %v919, 2
    %v926 = vadd.f32 %v915, %v922
    %v927 = vadd.f32 %v916, %v923
    %v928 = vstv %s233
    %v929 = vmul.f32 %v928, %v121
    %v930 = vmul.f32 %v928, %v122
    %v933 = vrot.slane %v929, 2
    %v934 = vrot.slane %v930, 2
    %v937 = vadd.f32 %v926, %v933
    %v938 = vadd.f32 %v927, %v934
    %v939 = vstv %s234
    %v940 = vmul.f32 %v939, %v134
    %v941 = vmul.f32 %v939, %v135
    %v944 = vrot.slane %v940, 2
    %v945 = vrot.slane %v941, 2
    %v948 = vadd.f32 %v937, %v944
    %v949 = vadd.f32 %v938, %v945
    %v950 = vstv %s235
    %v951 = vmul.f32 %v950, %v143
    %v952 = vmul.f32 %v950, %v144
    %v955 = vrot.slane %v951, 2
    %v956 = vrot.slane %v952, 2
    %v959 = vadd.f32 %v948, %v955
    %v960 = vadd.f32 %v949, %v956
    %v961 = vstv %s236
    %v962 = vmul.f32 %v961, %v154
    %v963 = vmul.f32 %v961, %v155
    %v966 = vrot.slane %v962, 2
    %v967 = vrot.slane %v963, 2
    %v970 = vadd.f32 %v959, %v966
    %v971 = vadd.f32 %v960, %v967
    %v974 = vrot.slane %v773, 7
    %vm975 = vcmask 1040384
    %v976 = vsel %vm975, %v772, %v974
    %v978 = vlaneseq
    %vm979 = vcmp.ge.s32.totalorder %v978, 0
    %vm980 = vcmp.lt.s32.totalorder %v978, 256
    %vm981 = vmand %vm979, %vm980
    %982 = vst.msk [vmem:[%s3] ss:$8 sm:$0x3] %vm981, %v976
    %983 = vst.msk [vmem:[%s3] ss:$8 sm:$0x0] %vm981, %v976
    %v986 = vrot.slane %v872, 7
    %v987 = vsel %vm975, %v871, %v986
    %s989 = scalar_lea.vmem %s3, 1
    %990 = vst.msk [vmem:[%s989] ss:$8 sm:$0x3] %vm981, %v987
    %991 = vst.msk [vmem:[%s989] ss:$8 sm:$0x0] %vm981, %v987
    %v994 = vrot.slane %v971, 7
    %v995 = vsel %vm975, %v970, %v994
    %s997 = scalar_lea.vmem %s3, 2
    %998 = vst.msk [vmem:[%s997] ss:$8 sm:$0x3] %vm981, %v995
    %999 = vst.msk [vmem:[%s997] ss:$8 sm:$0x0] %vm981, %v995
    %1000 = vst [vmem:[#allocation1] sm:$0xff] %v772
    %1001 = vst [vmem:[#allocation1 + $0x9] sm:$0xff] %v773
    %s1002 = scalar_lea.vmem [#allocation1], 3
    %v1003 = vld [vmem:[%s1002] ss:$9 sm:$0xff]
    %s1005 = scalar_lea.vmem %s3, 3
    %1006 = vst.msk [vmem:[%s1005] ss:$8 sm:$0x3] %vm981, %v1003
    %1007 = vst.msk [vmem:[%s1005] ss:$8 sm:$0x0] %vm981, %v1003
    %1008 = vst [vmem:[#allocation1] sm:$0xff] %v871
    %1009 = vst [vmem:[#allocation1 + $0x9] sm:$0xff] %v872
    %s1010 = scalar_lea.vmem [#allocation1], 3
    %v1011 = vld [vmem:[%s1010] ss:$9 sm:$0xff]
    %s1013 = scalar_lea.vmem %s3, 4
    %1014 = vst.msk [vmem:[%s1013] ss:$8 sm:$0x3] %vm981, %v1011
    %1015 = vst.msk [vmem:[%s1013] ss:$8 sm:$0x0] %vm981, %v1011
    %1016 = vst [vmem:[#allocation1] sm:$0xff] %v970
    %1017 = vst [vmem:[#allocation1 + $0x9] sm:$0xff] %v971
    %s1018 = scalar_lea.vmem [#allocation1], 3
    %v1019 = vld [vmem:[%s1018] ss:$9 sm:$0xff]
    %s1021 = scalar_lea.vmem %s3, 5
    %1022 = vst.msk [vmem:[%s1021] ss:$8 sm:$0x3] %vm981, %v1019
    %1023 = vst.msk [vmem:[%s1021] ss:$8 sm:$0x0] %vm981, %v1019
    // Predicated region
    $region22: #{conv3x3_pallas.1} parent=1 // pred_check
      _
    $region23: #{conv3x3_pallas.1} parent=1 // pred_check_branch
      %1025 = sbr.rel (0) target = $region25
    $region24: #{conv3x3_pallas.1} parent=1 // pred_region
      _
    $region25: #{conv3x3_pallas.1} parent=1 // pred_fallthru
      _
    // Predicated region
    $region26: #{conv3x3_pallas.1} parent=1 // pred_check
      _
    $region27: #{conv3x3_pallas.1} parent=1 // pred_check_branch
      %1027 = sbr.rel (0) target = $region29
    $region28: #{conv3x3_pallas.1} parent=1 // pred_region
      _
    $region29: #{conv3x3_pallas.1} parent=1 // pred_fallthru
      _
    %1028 = vsyncpa [#allocation3], 1
    %1029 = vsyncpa [#allocation5], 1

</llo_original>
